<compile_context>
chip_gen: v5e
topology: v5e:2x2
jax: 0.10.0
libtpu: 0.0.40
codegen_flags: <defaults>
</compile_context>

<pallas_src>
import functools

import numpy as np
import jax
import jax.numpy as jnp
from jax.experimental import pallas as pl
from jax.experimental.pallas import tpu as pltpu


# ----------------------------- fused forward kernel -----------------------------

def _fno_fused_kernel(x_ref, in_w_ref, in_b_ref, f2_ref, i2_ref,
                      wbig_ref, mask2_ref, rmat2_ref,
                      ff1w_ref, ff1b_ref, ff2w_ref, ff2b_ref,
                      out1w_ref, out1b_ref, o_ref,
                      *, n_layers, modes, width, batch_block):
    """Whole FNOFactorized1DBlock forward for `batch_block` elements (channels last)."""
    f32 = jnp.float32
    bf16 = jnp.bfloat16
    K, C = modes, width

    in_w = in_w_ref[...]            # (Din, C)   bf16
    in_b = in_b_ref[...]            # (1, C)     f32
    f2 = f2_ref[...]                # (2K, L)    bf16  = [fcos; fsin]
    i2 = i2_ref[...]                # (L, 2K)    bf16  = [icos | isin]
    mask2 = mask2_ref[...]          # (K, 2KC)   f32   block-diag selection (0/1)
    rmat2 = rmat2_ref[...]          # (2KC, 2C)  bf16  fold matrix (0/1)
    out1w = out1w_ref[...]          # (C, 128)   bf16
    out1b = out1b_ref[...]          # (1, 128)   f32

    for bb in range(batch_block):                                    # static unroll
        x = x_ref[bb]                                                # (L, Din)
        # in_proj (WNLinear, wnorm=False) + identity dropout
        h = jnp.dot(x.astype(bf16), in_w, preferred_element_type=f32) + in_b   # (L, C)

        b = h
        for layer in range(n_layers):                                # static unroll
            # --- SpectralConv1d.forward_fourier: rfft(ortho) -> mode mix -> irfft(ortho)
            # rfft: real & imag halves in ONE matmul
            xri = jnp.dot(f2, h.astype(bf16), preferred_element_type=f32)       # (2K, C)
            xcat = jnp.concatenate([xri[:K, :], xri[K:, :]], axis=1)            # (K, 2C) = [Re|Im]
            # per-mode complex mix as one matmul against Wbig, then masked fold
            z = jnp.dot(xcat.astype(bf16), wbig_ref[layer],
                        preferred_element_type=f32)                             # (K, 2KC)
            zm = (z * mask2).astype(bf16)                                       # keep block k of row k
            roi = jnp.dot(zm, rmat2, preferred_element_type=f32)                # (K, 2C) = [Re|Im] out_ft
            ros = jnp.concatenate([roi[:, :C], roi[:, C:]], axis=0)             # (2K, C) = [Re; Im]
            # irfft: ONE matmul
            xf = jnp.dot(i2, ros.astype(bf16), preferred_element_type=f32)      # (L, C)

            # --- backcast FeedForward: WNLinear -> ReLU -> WNLinear, then residual
            t = jnp.dot(xf.astype(bf16), ff1w_ref[layer],
                        preferred_element_type=f32) + ff1b_ref[layer]
            t = jnp.maximum(t, 0.0)
            b = jnp.dot(t.astype(bf16), ff2w_ref[layer],
                        preferred_element_type=f32) + ff2b_ref[layer]
            h = h + b

        # out[0] = WNLinear(C, 128): exactly 128 lanes -> lane-dense store.
        # out[1] (128 -> 1) runs in XLA outside the kernel.
        o = jnp.dot(b.astype(bf16), out1w, preferred_element_type=f32) + out1b  # (L, 128)
        o_ref[bb] = o.astype(o_ref.dtype)


def fno_forward_pallas(x, kp, *, batch_block=1):
    B, L, din = x.shape
    n_layers = int(kp['ff1_w'].shape[0])
    C = int(kp['in_w'].shape[1])
    K = int(kp['mask2'].shape[0])
    assert B % batch_block == 0, "batch_block must divide B"
    grid = (B // batch_block,)

    kernel = functools.partial(_fno_fused_kernel, n_layers=n_layers, modes=K,
                               width=C, batch_block=batch_block)

    weights = (kp['in_w'], kp['in_b'], kp['f2'], kp['i2'],
               kp['wbig'], kp['mask2'], kp['rmat2'],
               kp['ff1_w'], kp['ff1_b'], kp['ff2_w'], kp['ff2_b'],
               kp['out1_w'], kp['out1_b'])

    def rep(a):
        # full-array block, always block 0 -> not re-DMA'd across grid steps
        return pl.BlockSpec(a.shape, lambda b, _nd=a.ndim: (0,) * _nd)

    # advisory cost estimate (helps XLA schedule around a latency-bound call)
    per_elem_flops = 2 * (L * din * C + L * C * 128) + n_layers * 2 * (
        (2 * K) * L * C + K * (2 * C) * (2 * K * C) + K * (2 * K * C) * (2 * C)
        + L * (2 * K) * C + L * C * (2 * C) + L * (2 * C) * C)
    w_bytes = sum(int(np.prod(w.shape)) * w.dtype.itemsize for w in weights)
    cost = pl.CostEstimate(
        flops=int(B * per_elem_flops),
        transcendentals=0,
        bytes_accessed=int(x.size * x.dtype.itemsize + B * L * 128 * 4 + w_bytes))

    o128 = pl.pallas_call(
        kernel,
        out_shape=jax.ShapeDtypeStruct((B, L, 128), jnp.float32),
        grid=grid,
        in_specs=[pl.BlockSpec((batch_block, L, din), lambda b: (b, 0, 0))]
                 + [rep(w) for w in weights],
        out_specs=pl.BlockSpec((batch_block, L, 128), lambda b: (b, 0, 0)),
        compiler_params=pltpu.CompilerParams(dimension_semantics=("parallel",)),
        cost_estimate=cost,
    )(x, *weights)

    # out[1]: WNLinear(128, 1) — trivial, lane-sparse; done in XLA (exact).
    forecast = (o128 @ kp['out2_w'] + kp['out2_b']).astype(x.dtype)
    return {'forecast': forecast, 'forecast_list': []}


# ------------------------------ setup / packing ---------------------------------

def make_dft_mats(L, K):
    """Real matrices implementing rfft/irfft (norm='ortho') truncated to K modes."""
    l = np.arange(L, dtype=np.float64)
    k = np.arange(K, dtype=np.float64)
    scale = 1.0 / np.sqrt(L)
    ang = 2.0 * np.pi * np.outer(k, l) / L                  # (K, L)
    fcos = np.cos(ang) * scale
    fsin = -np.sin(ang) * scale
    ang_i = 2.0 * np.pi * np.outer(l, k) / L                # (L, K)
    c_r = np.full((K,), 2.0 * scale); c_r[0] = scale        # DC counted once
    c_i = np.full((K,), -2.0 * scale); c_i[0] = 0.0         # irfft drops DC imag
    if L % 2 == 0 and K == L // 2 + 1:                      # Nyquist: once, imag dropped
        c_r[K - 1] = scale
        c_i[K - 1] = 0.0
    icos = np.cos(ang_i) * c_r[None, :]
    isin = np.sin(ang_i) * c_i[None, :]
    return (fcos.astype(np.float32), fsin.astype(np.float32),
            icos.astype(np.float32), isin.astype(np.float32))


def _lin(key, din, dout):
    kw, kb = jax.random.split(key)
    bound = 1.0 / np.sqrt(din)
    w = jax.random.uniform(kw, (din, dout), jnp.float32, -bound, bound)
    b = jax.random.uniform(kb, (dout,), jnp.float32, -bound, bound)
    return w, b


def init_params(key, input_dim, width, modes, n_layers):
    keys = jax.random.split(key, 2 + n_layers)
    in_w, in_b = _lin(keys[0], input_dim, width)
    layers = []
    # xavier_normal_ on FloatTensor(width, width, modes, 2)
    std = np.sqrt(2.0 / (width * modes * 2 + width * modes * 2))
    for i in range(n_layers):
        k4 = jax.random.split(keys[2 + i], 3)
        w4 = std * jax.random.normal(k4[0], (width, width, modes, 2), jnp.float32)
        ff1_w, ff1_b = _lin(k4[1], width, 2 * width)        # FeedForward layer 0 (+ReLU)
        ff2_w, ff2_b = _lin(k4[2], 2 * width, width)        # FeedForward layer 1
        layers.append(dict(w4=w4, ff1_w=ff1_w, ff1_b=ff1_b, ff2_w=ff2_w, ff2_b=ff2_b))
    ko = jax.random.split(keys[1], 2)
    out1_w, out1_b = _lin(ko[0], width, 128)
    out2_w, out2_b = _lin(ko[1], 128, 1)
    return dict(in_w=in_w, in_b=in_b, layers=layers,
                out1_w=out1_w, out1_b=out1_b, out2_w=out2_w, out2_b=out2_b)


def pack_params(params, L, modes):
    """Precompute kernel-ready operands: stacked real DFT matrices, fused complex-mix
    weight Wbig, block-diag mask/fold matrices, stacked per-layer FF weights (bf16
    for all matmul RHS, f32 for biases)."""
    n_layers = len(params['layers'])
    assert n_layers >= 1, "n_layers must be >= 1 (module uses `b` from last layer)"
    C = int(np.asarray(params['in_w']).shape[1])
    K = modes
    assert K <= L // 2 + 1, "modes must be <= L//2 + 1 for a valid truncated rfft"

    fcos, fsin, icos, isin = make_dft_mats(L, K)
    f2 = np.concatenate([fcos, fsin], axis=0)               # (2K, L)
    i2 = np.concatenate([icos, isin], axis=1)               # (L, 2K)

    wbig, ff1w, ff1b, ff2w, ff2b = [], [], [], [], []
    for layer in params['layers']:
        w4 = np.asarray(layer['w4'])                         # (I, O, K, 2)
        # wrf[i, k*C + o] = Wr[i, o, k]
        wrf = np.transpose(w4[..., 0], (0, 2, 1)).reshape(C, K * C)
        wif = np.transpose(w4[..., 1], (0, 2, 1)).reshape(C, K * C)
        # [xr|xi] @ Wbig = [xr@Wr - xi@Wi | xr@Wi + xi@Wr]
        wbig.append(np.block([[wrf, wif], [-wif, wrf]]))     # (2C, 2KC)
        ff1w.append(np.asarray(layer['ff1_w']))
        ff1b.append(np.asarray(layer['ff1_b'])[None, :])
        ff2w.append(np.asarray(layer['ff2_w']))
        ff2b.append(np.asarray(layer['ff2_b'])[None, :])

    # block-diagonal selection + fold: keep block k of row k, fold (K*C) -> C
    mask = np.zeros((K, K * C), np.float32)
    rmat = np.zeros((K * C, C), np.float32)
    for k in range(K):
        mask[k, k * C:(k + 1) * C] = 1.0
        rmat[k * C:(k + 1) * C, :] = np.eye(C, dtype=np.float32)
    mask2 = np.concatenate([mask, mask], axis=1)             # (K, 2KC)
    rmat2 = np.zeros((2 * K * C, 2 * C), np.float32)         # blockdiag(rmat, rmat)
    rmat2[:K * C, :C] = rmat
    rmat2[K * C:, C:] = rmat

    bf = lambda a: jnp.asarray(np.asarray(a, np.float32), dtype=jnp.bfloat16)
    fl = lambda a: jnp.asarray(np.asarray(a, np.float32))

    return dict(
        in_w=bf(params['in_w']),
        in_b=fl(np.asarray(params['in_b'])[None, :]),
        f2=bf(f2), i2=bf(i2),
        wbig=bf(np.stack(wbig)), mask2=fl(mask2), rmat2=bf(rmat2),
        ff1_w=bf(np.stack(ff1w)), ff1_b=fl(np.stack(ff1b)),
        ff2_w=bf(np.stack(ff2w)), ff2_b=fl(np.stack(ff2b)),
        out1_w=bf(params['out1_w']),
        out1_b=fl(np.asarray(params['out1_b'])[None, :]),
        out2_w=fl(params['out2_w']),
        out2_b=fl(params['out2_b']),
    )


# ----------------------- pure-JAX reference (for checking) ----------------------

def reference_forward(x, params, modes):
    h = x @ params['in_w'] + params['in_b']
    b = None
    for layer in params['layers']:
        z = jnp.swapaxes(h, 1, 2)                            # (B, I, L)
        L = z.shape[-1]
        z_ft = jnp.fft.rfft(z, axis=-1, norm='ortho')
        w = layer['w4'][..., 0] + 1j * layer['w4'][..., 1]   # (I, O, K)
        out_ft = jnp.zeros(z_ft.shape, dtype=z_ft.dtype)
        out_ft = out_ft.at[:, :, :modes].set(
            jnp.einsum('bix,iox->box', z_ft[:, :, :modes], w))
        xf = jnp.fft.irfft(out_ft, n=L, axis=-1, norm='ortho')
        xf = jnp.swapaxes(xf, 1, 2)                          # (B, L, O)
        t = jax.nn.relu(xf @ layer['ff1_w'] + layer['ff1_b'])
        b = t @ layer['ff2_w'] + layer['ff2_b']
        h = h + b
    o = b @ params['out1_w'] + params['out1_b']
    o = o @ params['out2_w'] + params['out2_b']
    return o


# ------------------------------------ main ---------------------------------------

if __name__ == "__main__":
    B, L, INPUT_DIM, WIDTH, MODES, N_LAYERS = 2, 16, 12, 32, 5, 4

    key = jax.random.PRNGKey(0)
    kx, kparam = jax.random.split(key)
    x = jax.random.normal(kx, (B, L, INPUT_DIM), jnp.float32)
    params = init_params(kparam, INPUT_DIM, WIDTH, MODES, N_LAYERS)
    kparams = pack_params(params, L, MODES)

    # batch_block=1 -> grid=(B,) "parallel" (keeps both v7x TCs busy);
    # on single-TC v5e/v6e pass batch_block=B to fold the grid into one step.
    fwd = jax.jit(functools.partial(fno_forward_pallas, batch_block=1))
    out = fwd(x, kparams)
    jax.block_until_ready(out)

    assert out['forecast'].shape == (B, L, 1)
    assert out['forecast_list'] == []

    ref = reference_forward(x, params, MODES)
    np.testing.assert_allclose(np.asarray(out['forecast']), np.asarray(ref),
                               rtol=3e-2, atol=3e-2)
    print("KERNEL_OK")
</pallas_src>

<mosaic_0001>
module attributes {stable_mosaic.version = 11 : i64} {
  func.func @_fno_fused_kernel(%arg0: i32, %arg1: memref<1x16x12xf32, #tpu.memory_space<vmem>>, %arg2: memref<12x32xbf16, #tpu.memory_space<vmem>>, %arg3: memref<1x32xf32, #tpu.memory_space<vmem>>, %arg4: memref<10x16xbf16, #tpu.memory_space<vmem>>, %arg5: memref<16x10xbf16, #tpu.memory_space<vmem>>, %arg6: memref<4x64x320xbf16, #tpu.memory_space<vmem>>, %arg7: memref<5x320xf32, #tpu.memory_space<vmem>>, %arg8: memref<320x64xbf16, #tpu.memory_space<vmem>>, %arg9: memref<4x32x64xbf16, #tpu.memory_space<vmem>>, %arg10: memref<4x1x64xf32, #tpu.memory_space<vmem>>, %arg11: memref<4x64x32xbf16, #tpu.memory_space<vmem>>, %arg12: memref<4x1x32xf32, #tpu.memory_space<vmem>>, %arg13: memref<32x128xbf16, #tpu.memory_space<vmem>>, %arg14: memref<1x128xf32, #tpu.memory_space<vmem>>, %arg15: memref<1x16x128xf32, #tpu.memory_space<vmem>>) attributes {dimension_semantics = [#tpu.dimension_semantics<parallel>], iteration_bounds = array<i64: 2>, scalar_prefetch = 0 : i64, scratch_operands = 0 : i64, tpu.core_type = #tpu.core_type<tc>, window_params = [{transform_indices = @transform_0, window_bounds = array<i64: 1, 16, 12>}, {pipeline_mode = #tpu.pipeline_mode<synchronous>, transform_indices = @transform_1, window_bounds = array<i64: 12, 32>}, {pipeline_mode = #tpu.pipeline_mode<synchronous>, transform_indices = @transform_2, window_bounds = array<i64: 1, 32>}, {pipeline_mode = #tpu.pipeline_mode<synchronous>, transform_indices = @transform_3, window_bounds = array<i64: 10, 16>}, {pipeline_mode = #tpu.pipeline_mode<synchronous>, transform_indices = @transform_4, window_bounds = array<i64: 16, 10>}, {pipeline_mode = #tpu.pipeline_mode<synchronous>, transform_indices = @transform_5, window_bounds = array<i64: 4, 64, 320>}, {pipeline_mode = #tpu.pipeline_mode<synchronous>, transform_indices = @transform_6, window_bounds = array<i64: 5, 320>}, {pipeline_mode = #tpu.pipeline_mode<synchronous>, transform_indices = @transform_7, window_bounds = array<i64: 320, 64>}, {pipeline_mode = #tpu.pipeline_mode<synchronous>, transform_indices = @transform_8, window_bounds = array<i64: 4, 32, 64>}, {pipeline_mode = #tpu.pipeline_mode<synchronous>, transform_indices = @transform_9, window_bounds = array<i64: 4, 1, 64>}, {pipeline_mode = #tpu.pipeline_mode<synchronous>, transform_indices = @transform_10, window_bounds = array<i64: 4, 64, 32>}, {pipeline_mode = #tpu.pipeline_mode<synchronous>, transform_indices = @transform_11, window_bounds = array<i64: 4, 1, 32>}, {pipeline_mode = #tpu.pipeline_mode<synchronous>, transform_indices = @transform_12, window_bounds = array<i64: 32, 128>}, {pipeline_mode = #tpu.pipeline_mode<synchronous>, transform_indices = @transform_13, window_bounds = array<i64: 1, 128>}, {transform_indices = @transform_14, window_bounds = array<i64: 1, 16, 128>}]} {
    %c0 = arith.constant 0 : index
    %c0_0 = arith.constant 0 : index
    %0 = vector.load %arg2[%c0, %c0_0] : memref<12x32xbf16, #tpu.memory_space<vmem>>, vector<12x32xbf16>
    %c0_1 = arith.constant 0 : index
    %c0_2 = arith.constant 0 : index
    %1 = vector.load %arg3[%c0_1, %c0_2] : memref<1x32xf32, #tpu.memory_space<vmem>>, vector<1x32xf32>
    %c0_3 = arith.constant 0 : index
    %c0_4 = arith.constant 0 : index
    %2 = vector.load %arg4[%c0_3, %c0_4] : memref<10x16xbf16, #tpu.memory_space<vmem>>, vector<10x16xbf16>
    %c0_5 = arith.constant 0 : index
    %c0_6 = arith.constant 0 : index
    %3 = vector.load %arg5[%c0_5, %c0_6] : memref<16x10xbf16, #tpu.memory_space<vmem>>, vector<16x10xbf16>
    %c0_7 = arith.constant 0 : index
    %c0_8 = arith.constant 0 : index
    %4 = vector.load %arg7[%c0_7, %c0_8] : memref<5x320xf32, #tpu.memory_space<vmem>>, vector<5x320xf32>
    %c0_9 = arith.constant 0 : index
    %c0_10 = arith.constant 0 : index
    %5 = vector.load %arg8[%c0_9, %c0_10] : memref<320x64xbf16, #tpu.memory_space<vmem>>, vector<320x64xbf16>
    %c0_11 = arith.constant 0 : index
    %c0_12 = arith.constant 0 : index
    %6 = vector.load %arg13[%c0_11, %c0_12] : memref<32x128xbf16, #tpu.memory_space<vmem>>, vector<32x128xbf16>
    %c0_13 = arith.constant 0 : index
    %c0_14 = arith.constant 0 : index
    %7 = vector.load %arg14[%c0_13, %c0_14] : memref<1x128xf32, #tpu.memory_space<vmem>>, vector<1x128xf32>
    %c0_15 = arith.constant 0 : index
    %c0_16 = arith.constant 0 : index
    %c0_17 = arith.constant 0 : index
    %8 = vector.load %arg1[%c0_15, %c0_16, %c0_17] : memref<1x16x12xf32, #tpu.memory_space<vmem>>, vector<1x16x12xf32>
    %9 = vector.shape_cast %8 : vector<1x16x12xf32> to vector<16x12xf32>
    %10 = arith.truncf %9 : vector<16x12xf32> to vector<16x12xbf16>
    %cst = arith.constant dense<0.000000e+00> : vector<16x32xf32>
    %11 = tpu.matmul %10, %0, %cst {dimension_numbers = #tpu.dot_dimension_numbers<[1], [0], [0], [1], [0, 0, 1, 1], [], []>} : vector<16x12xbf16>, vector<12x32xbf16>, vector<16x32xf32> -> vector<16x32xf32>
    %12 = vector.broadcast %1 : vector<1x32xf32> to vector<16x32xf32>
    %13 = arith.addf %11, %12 : vector<16x32xf32>
    %14 = arith.truncf %13 : vector<16x32xf32> to vector<16x32xbf16>
    %cst_18 = arith.constant dense<0.000000e+00> : vector<10x32xf32>
    %15 = tpu.matmul %2, %14, %cst_18 {dimension_numbers = #tpu.dot_dimension_numbers<[1], [0], [0], [1], [0, 0, 1, 1], [], []>} : vector<10x16xbf16>, vector<16x32xbf16>, vector<10x32xf32> -> vector<10x32xf32>
    %16 = vector.extract_strided_slice %15 {offsets = [0, 0], sizes = [5, 32], strides = [1, 1]} : vector<10x32xf32> to vector<5x32xf32>
    %17 = vector.extract_strided_slice %15 {offsets = [5, 0], sizes = [5, 32], strides = [1, 1]} : vector<10x32xf32> to vector<5x32xf32>
    %18 = tpu.concatenate %16, %17 in 1 : vector<5x32xf32>, vector<5x32xf32> -> vector<5x64xf32>
    %19 = arith.truncf %18 : vector<5x64xf32> to vector<5x64xbf16>
    %c0_19 = arith.constant 0 : index
    %c0_20 = arith.constant 0 : index
    %c0_21 = arith.constant 0 : index
    %20 = vector.load %arg6[%c0_19, %c0_20, %c0_21] : memref<4x64x320xbf16, #tpu.memory_space<vmem>>, vector<1x64x320xbf16>
    %21 = vector.shape_cast %20 : vector<1x64x320xbf16> to vector<64x320xbf16>
    %cst_22 = arith.constant dense<0.000000e+00> : vector<5x320xf32>
    %22 = tpu.matmul %19, %21, %cst_22 {dimension_numbers = #tpu.dot_dimension_numbers<[1], [0], [0], [1], [0, 0, 1, 1], [], []>} : vector<5x64xbf16>, vector<64x320xbf16>, vector<5x320xf32> -> vector<5x320xf32>
    %23 = arith.mulf %22, %4 : vector<5x320xf32>
    %24 = arith.truncf %23 : vector<5x320xf32> to vector<5x320xbf16>
    %cst_23 = arith.constant dense<0.000000e+00> : vector<5x64xf32>
    %25 = tpu.matmul %24, %5, %cst_23 {dimension_numbers = #tpu.dot_dimension_numbers<[1], [0], [0], [1], [0, 0, 1, 1], [], []>} : vector<5x320xbf16>, vector<320x64xbf16>, vector<5x64xf32> -> vector<5x64xf32>
    %26 = vector.extract_strided_slice %25 {offsets = [0, 0], sizes = [5, 32], strides = [1, 1]} : vector<5x64xf32> to vector<5x32xf32>
    %27 = vector.extract_strided_slice %25 {offsets = [0, 32], sizes = [5, 32], strides = [1, 1]} : vector<5x64xf32> to vector<5x32xf32>
    %28 = tpu.concatenate %26, %27 in 0 : vector<5x32xf32>, vector<5x32xf32> -> vector<10x32xf32>
    %29 = arith.truncf %28 : vector<10x32xf32> to vector<10x32xbf16>
    %cst_24 = arith.constant dense<0.000000e+00> : vector<16x32xf32>
    %30 = tpu.matmul %3, %29, %cst_24 {dimension_numbers = #tpu.dot_dimension_numbers<[1], [0], [0], [1], [0, 0, 1, 1], [], []>} : vector<16x10xbf16>, vector<10x32xbf16>, vector<16x32xf32> -> vector<16x32xf32>
    %31 = arith.truncf %30 : vector<16x32xf32> to vector<16x32xbf16>
    %c0_25 = arith.constant 0 : index
    %c0_26 = arith.constant 0 : index
    %c0_27 = arith.constant 0 : index
    %32 = vector.load %arg9[%c0_25, %c0_26, %c0_27] : memref<4x32x64xbf16, #tpu.memory_space<vmem>>, vector<1x32x64xbf16>
    %33 = vector.shape_cast %32 : vector<1x32x64xbf16> to vector<32x64xbf16>
    %cst_28 = arith.constant dense<0.000000e+00> : vector<16x64xf32>
    %34 = tpu.matmul %31, %33, %cst_28 {dimension_numbers = #tpu.dot_dimension_numbers<[1], [0], [0], [1], [0, 0, 1, 1], [], []>} : vector<16x32xbf16>, vector<32x64xbf16>, vector<16x64xf32> -> vector<16x64xf32>
    %c0_29 = arith.constant 0 : index
    %c0_30 = arith.constant 0 : index
    %c0_31 = arith.constant 0 : index
    %35 = vector.load %arg10[%c0_29, %c0_30, %c0_31] : memref<4x1x64xf32, #tpu.memory_space<vmem>>, vector<1x1x64xf32>
    %36 = vector.shape_cast %35 : vector<1x1x64xf32> to vector<1x64xf32>
    %37 = vector.broadcast %36 : vector<1x64xf32> to vector<16x64xf32>
    %38 = arith.addf %34, %37 : vector<16x64xf32>
    %cst_32 = arith.constant 0.000000e+00 : f32
    %39 = vector.broadcast %cst_32 : f32 to vector<16x64xf32>
    %40 = arith.maximumf %38, %39 : vector<16x64xf32>
    %41 = arith.truncf %40 : vector<16x64xf32> to vector<16x64xbf16>
    %c0_33 = arith.constant 0 : index
    %c0_34 = arith.constant 0 : index
    %c0_35 = arith.constant 0 : index
    %42 = vector.load %arg11[%c0_33, %c0_34, %c0_35] : memref<4x64x32xbf16, #tpu.memory_space<vmem>>, vector<1x64x32xbf16>
    %43 = vector.shape_cast %42 : vector<1x64x32xbf16> to vector<64x32xbf16>
    %cst_36 = arith.constant dense<0.000000e+00> : vector<16x32xf32>
    %44 = tpu.matmul %41, %43, %cst_36 {dimension_numbers = #tpu.dot_dimension_numbers<[1], [0], [0], [1], [0, 0, 1, 1], [], []>} : vector<16x64xbf16>, vector<64x32xbf16>, vector<16x32xf32> -> vector<16x32xf32>
    %c0_37 = arith.constant 0 : index
    %c0_38 = arith.constant 0 : index
    %c0_39 = arith.constant 0 : index
    %45 = vector.load %arg12[%c0_37, %c0_38, %c0_39] : memref<4x1x32xf32, #tpu.memory_space<vmem>>, vector<1x1x32xf32>
    %46 = vector.shape_cast %45 : vector<1x1x32xf32> to vector<1x32xf32>
    %47 = vector.broadcast %46 : vector<1x32xf32> to vector<16x32xf32>
    %48 = arith.addf %44, %47 : vector<16x32xf32>
    %49 = arith.addf %13, %48 : vector<16x32xf32>
    %50 = arith.truncf %49 : vector<16x32xf32> to vector<16x32xbf16>
    %cst_40 = arith.constant dense<0.000000e+00> : vector<10x32xf32>
    %51 = tpu.matmul %2, %50, %cst_40 {dimension_numbers = #tpu.dot_dimension_numbers<[1], [0], [0], [1], [0, 0, 1, 1], [], []>} : vector<10x16xbf16>, vector<16x32xbf16>, vector<10x32xf32> -> vector<10x32xf32>
    %52 = vector.extract_strided_slice %51 {offsets = [0, 0], sizes = [5, 32], strides = [1, 1]} : vector<10x32xf32> to vector<5x32xf32>
    %53 = vector.extract_strided_slice %51 {offsets = [5, 0], sizes = [5, 32], strides = [1, 1]} : vector<10x32xf32> to vector<5x32xf32>
    %54 = tpu.concatenate %52, %53 in 1 : vector<5x32xf32>, vector<5x32xf32> -> vector<5x64xf32>
    %55 = arith.truncf %54 : vector<5x64xf32> to vector<5x64xbf16>
    %c1 = arith.constant 1 : index
    %c0_41 = arith.constant 0 : index
    %c0_42 = arith.constant 0 : index
    %56 = vector.load %arg6[%c1, %c0_41, %c0_42] : memref<4x64x320xbf16, #tpu.memory_space<vmem>>, vector<1x64x320xbf16>
    %57 = vector.shape_cast %56 : vector<1x64x320xbf16> to vector<64x320xbf16>
    %cst_43 = arith.constant dense<0.000000e+00> : vector<5x320xf32>
    %58 = tpu.matmul %55, %57, %cst_43 {dimension_numbers = #tpu.dot_dimension_numbers<[1], [0], [0], [1], [0, 0, 1, 1], [], []>} : vector<5x64xbf16>, vector<64x320xbf16>, vector<5x320xf32> -> vector<5x320xf32>
    %59 = arith.mulf %58, %4 : vector<5x320xf32>
    %60 = arith.truncf %59 : vector<5x320xf32> to vector<5x320xbf16>
    %cst_44 = arith.constant dense<0.000000e+00> : vector<5x64xf32>
    %61 = tpu.matmul %60, %5, %cst_44 {dimension_numbers = #tpu.dot_dimension_numbers<[1], [0], [0], [1], [0, 0, 1, 1], [], []>} : vector<5x320xbf16>, vector<320x64xbf16>, vector<5x64xf32> -> vector<5x64xf32>
    %62 = vector.extract_strided_slice %61 {offsets = [0, 0], sizes = [5, 32], strides = [1, 1]} : vector<5x64xf32> to vector<5x32xf32>
    %63 = vector.extract_strided_slice %61 {offsets = [0, 32], sizes = [5, 32], strides = [1, 1]} : vector<5x64xf32> to vector<5x32xf32>
    %64 = tpu.concatenate %62, %63 in 0 : vector<5x32xf32>, vector<5x32xf32> -> vector<10x32xf32>
    %65 = arith.truncf %64 : vector<10x32xf32> to vector<10x32xbf16>
    %cst_45 = arith.constant dense<0.000000e+00> : vector<16x32xf32>
    %66 = tpu.matmul %3, %65, %cst_45 {dimension_numbers = #tpu.dot_dimension_numbers<[1], [0], [0], [1], [0, 0, 1, 1], [], []>} : vector<16x10xbf16>, vector<10x32xbf16>, vector<16x32xf32> -> vector<16x32xf32>
    %67 = arith.truncf %66 : vector<16x32xf32> to vector<16x32xbf16>
    %c1_46 = arith.constant 1 : index
    %c0_47 = arith.constant 0 : index
    %c0_48 = arith.constant 0 : index
    %68 = vector.load %arg9[%c1_46, %c0_47, %c0_48] : memref<4x32x64xbf16, #tpu.memory_space<vmem>>, vector<1x32x64xbf16>
    %69 = vector.shape_cast %68 : vector<1x32x64xbf16> to vector<32x64xbf16>
    %cst_49 = arith.constant dense<0.000000e+00> : vector<16x64xf32>
    %70 = tpu.matmul %67, %69, %cst_49 {dimension_numbers = #tpu.dot_dimension_numbers<[1], [0], [0], [1], [0, 0, 1, 1], [], []>} : vector<16x32xbf16>, vector<32x64xbf16>, vector<16x64xf32> -> vector<16x64xf32>
    %c1_50 = arith.constant 1 : index
    %c0_51 = arith.constant 0 : index
    %c0_52 = arith.constant 0 : index
    %71 = vector.load %arg10[%c1_50, %c0_51, %c0_52] : memref<4x1x64xf32, #tpu.memory_space<vmem>>, vector<1x1x64xf32>
    %72 = vector.shape_cast %71 : vector<1x1x64xf32> to vector<1x64xf32>
    %73 = vector.broadcast %72 : vector<1x64xf32> to vector<16x64xf32>
    %74 = arith.addf %70, %73 : vector<16x64xf32>
    %cst_53 = arith.constant 0.000000e+00 : f32
    %75 = vector.broadcast %cst_53 : f32 to vector<16x64xf32>
    %76 = arith.maximumf %74, %75 : vector<16x64xf32>
    %77 = arith.truncf %76 : vector<16x64xf32> to vector<16x64xbf16>
    %c1_54 = arith.constant 1 : index
    %c0_55 = arith.constant 0 : index
    %c0_56 = arith.constant 0 : index
    %78 = vector.load %arg11[%c1_54, %c0_55, %c0_56] : memref<4x64x32xbf16, #tpu.memory_space<vmem>>, vector<1x64x32xbf16>
    %79 = vector.shape_cast %78 : vector<1x64x32xbf16> to vector<64x32xbf16>
    %cst_57 = arith.constant dense<0.000000e+00> : vector<16x32xf32>
    %80 = tpu.matmul %77, %79, %cst_57 {dimension_numbers = #tpu.dot_dimension_numbers<[1], [0], [0], [1], [0, 0, 1, 1], [], []>} : vector<16x64xbf16>, vector<64x32xbf16>, vector<16x32xf32> -> vector<16x32xf32>
    %c1_58 = arith.constant 1 : index
    %c0_59 = arith.constant 0 : index
    %c0_60 = arith.constant 0 : index
    %81 = vector.load %arg12[%c1_58, %c0_59, %c0_60] : memref<4x1x32xf32, #tpu.memory_space<vmem>>, vector<1x1x32xf32>
    %82 = vector.shape_cast %81 : vector<1x1x32xf32> to vector<1x32xf32>
    %83 = vector.broadcast %82 : vector<1x32xf32> to vector<16x32xf32>
    %84 = arith.addf %80, %83 : vector<16x32xf32>
    %85 = arith.addf %49, %84 : vector<16x32xf32>
    %86 = arith.truncf %85 : vector<16x32xf32> to vector<16x32xbf16>
    %cst_61 = arith.constant dense<0.000000e+00> : vector<10x32xf32>
    %87 = tpu.matmul %2, %86, %cst_61 {dimension_numbers = #tpu.dot_dimension_numbers<[1], [0], [0], [1], [0, 0, 1, 1], [], []>} : vector<10x16xbf16>, vector<16x32xbf16>, vector<10x32xf32> -> vector<10x32xf32>
    %88 = vector.extract_strided_slice %87 {offsets = [0, 0], sizes = [5, 32], strides = [1, 1]} : vector<10x32xf32> to vector<5x32xf32>
    %89 = vector.extract_strided_slice %87 {offsets = [5, 0], sizes = [5, 32], strides = [1, 1]} : vector<10x32xf32> to vector<5x32xf32>
    %90 = tpu.concatenate %88, %89 in 1 : vector<5x32xf32>, vector<5x32xf32> -> vector<5x64xf32>
    %91 = arith.truncf %90 : vector<5x64xf32> to vector<5x64xbf16>
    %c2 = arith.constant 2 : index
    %c0_62 = arith.constant 0 : index
    %c0_63 = arith.constant 0 : index
    %92 = vector.load %arg6[%c2, %c0_62, %c0_63] : memref<4x64x320xbf16, #tpu.memory_space<vmem>>, vector<1x64x320xbf16>
    %93 = vector.shape_cast %92 : vector<1x64x320xbf16> to vector<64x320xbf16>
    %cst_64 = arith.constant dense<0.000000e+00> : vector<5x320xf32>
    %94 = tpu.matmul %91, %93, %cst_64 {dimension_numbers = #tpu.dot_dimension_numbers<[1], [0], [0], [1], [0, 0, 1, 1], [], []>} : vector<5x64xbf16>, vector<64x320xbf16>, vector<5x320xf32> -> vector<5x320xf32>
    %95 = arith.mulf %94, %4 : vector<5x320xf32>
    %96 = arith.truncf %95 : vector<5x320xf32> to vector<5x320xbf16>
    %cst_65 = arith.constant dense<0.000000e+00> : vector<5x64xf32>
    %97 = tpu.matmul %96, %5, %cst_65 {dimension_numbers = #tpu.dot_dimension_numbers<[1], [0], [0], [1], [0, 0, 1, 1], [], []>} : vector<5x320xbf16>, vector<320x64xbf16>, vector<5x64xf32> -> vector<5x64xf32>
    %98 = vector.extract_strided_slice %97 {offsets = [0, 0], sizes = [5, 32], strides = [1, 1]} : vector<5x64xf32> to vector<5x32xf32>
    %99 = vector.extract_strided_slice %97 {offsets = [0, 32], sizes = [5, 32], strides = [1, 1]} : vector<5x64xf32> to vector<5x32xf32>
    %100 = tpu.concatenate %98, %99 in 0 : vector<5x32xf32>, vector<5x32xf32> -> vector<10x32xf32>
    %101 = arith.truncf %100 : vector<10x32xf32> to vector<10x32xbf16>
    %cst_66 = arith.constant dense<0.000000e+00> : vector<16x32xf32>
    %102 = tpu.matmul %3, %101, %cst_66 {dimension_numbers = #tpu.dot_dimension_numbers<[1], [0], [0], [1], [0, 0, 1, 1], [], []>} : vector<16x10xbf16>, vector<10x32xbf16>, vector<16x32xf32> -> vector<16x32xf32>
    %103 = arith.truncf %102 : vector<16x32xf32> to vector<16x32xbf16>
    %c2_67 = arith.constant 2 : index
    %c0_68 = arith.constant 0 : index
    %c0_69 = arith.constant 0 : index
    %104 = vector.load %arg9[%c2_67, %c0_68, %c0_69] : memref<4x32x64xbf16, #tpu.memory_space<vmem>>, vector<1x32x64xbf16>
    %105 = vector.shape_cast %104 : vector<1x32x64xbf16> to vector<32x64xbf16>
    %cst_70 = arith.constant dense<0.000000e+00> : vector<16x64xf32>
    %106 = tpu.matmul %103, %105, %cst_70 {dimension_numbers = #tpu.dot_dimension_numbers<[1], [0], [0], [1], [0, 0, 1, 1], [], []>} : vector<16x32xbf16>, vector<32x64xbf16>, vector<16x64xf32> -> vector<16x64xf32>
    %c2_71 = arith.constant 2 : index
    %c0_72 = arith.constant 0 : index
    %c0_73 = arith.constant 0 : index
    %107 = vector.load %arg10[%c2_71, %c0_72, %c0_73] : memref<4x1x64xf32, #tpu.memory_space<vmem>>, vector<1x1x64xf32>
    %108 = vector.shape_cast %107 : vector<1x1x64xf32> to vector<1x64xf32>
    %109 = vector.broadcast %108 : vector<1x64xf32> to vector<16x64xf32>
    %110 = arith.addf %106, %109 : vector<16x64xf32>
    %cst_74 = arith.constant 0.000000e+00 : f32
    %111 = vector.broadcast %cst_74 : f32 to vector<16x64xf32>
    %112 = arith.maximumf %110, %111 : vector<16x64xf32>
    %113 = arith.truncf %112 : vector<16x64xf32> to vector<16x64xbf16>
    %c2_75 = arith.constant 2 : index
    %c0_76 = arith.constant 0 : index
    %c0_77 = arith.constant 0 : index
    %114 = vector.load %arg11[%c2_75, %c0_76, %c0_77] : memref<4x64x32xbf16, #tpu.memory_space<vmem>>, vector<1x64x32xbf16>
    %115 = vector.shape_cast %114 : vector<1x64x32xbf16> to vector<64x32xbf16>
    %cst_78 = arith.constant dense<0.000000e+00> : vector<16x32xf32>
    %116 = tpu.matmul %113, %115, %cst_78 {dimension_numbers = #tpu.dot_dimension_numbers<[1], [0], [0], [1], [0, 0, 1, 1], [], []>} : vector<16x64xbf16>, vector<64x32xbf16>, vector<16x32xf32> -> vector<16x32xf32>
    %c2_79 = arith.constant 2 : index
    %c0_80 = arith.constant 0 : index
    %c0_81 = arith.constant 0 : index
    %117 = vector.load %arg12[%c2_79, %c0_80, %c0_81] : memref<4x1x32xf32, #tpu.memory_space<vmem>>, vector<1x1x32xf32>
    %118 = vector.shape_cast %117 : vector<1x1x32xf32> to vector<1x32xf32>
    %119 = vector.broadcast %118 : vector<1x32xf32> to vector<16x32xf32>
    %120 = arith.addf %116, %119 : vector<16x32xf32>
    %121 = arith.addf %85, %120 : vector<16x32xf32>
    %122 = arith.truncf %121 : vector<16x32xf32> to vector<16x32xbf16>
    %cst_82 = arith.constant dense<0.000000e+00> : vector<10x32xf32>
    %123 = tpu.matmul %2, %122, %cst_82 {dimension_numbers = #tpu.dot_dimension_numbers<[1], [0], [0], [1], [0, 0, 1, 1], [], []>} : vector<10x16xbf16>, vector<16x32xbf16>, vector<10x32xf32> -> vector<10x32xf32>
    %124 = vector.extract_strided_slice %123 {offsets = [0, 0], sizes = [5, 32], strides = [1, 1]} : vector<10x32xf32> to vector<5x32xf32>
    %125 = vector.extract_strided_slice %123 {offsets = [5, 0], sizes = [5, 32], strides = [1, 1]} : vector<10x32xf32> to vector<5x32xf32>
    %126 = tpu.concatenate %124, %125 in 1 : vector<5x32xf32>, vector<5x32xf32> -> vector<5x64xf32>
    %127 = arith.truncf %126 : vector<5x64xf32> to vector<5x64xbf16>
    %c3 = arith.constant 3 : index
    %c0_83 = arith.constant 0 : index
    %c0_84 = arith.constant 0 : index
    %128 = vector.load %arg6[%c3, %c0_83, %c0_84] : memref<4x64x320xbf16, #tpu.memory_space<vmem>>, vector<1x64x320xbf16>
    %129 = vector.shape_cast %128 : vector<1x64x320xbf16> to vector<64x320xbf16>
    %cst_85 = arith.constant dense<0.000000e+00> : vector<5x320xf32>
    %130 = tpu.matmul %127, %129, %cst_85 {dimension_numbers = #tpu.dot_dimension_numbers<[1], [0], [0], [1], [0, 0, 1, 1], [], []>} : vector<5x64xbf16>, vector<64x320xbf16>, vector<5x320xf32> -> vector<5x320xf32>
    %131 = arith.mulf %130, %4 : vector<5x320xf32>
    %132 = arith.truncf %131 : vector<5x320xf32> to vector<5x320xbf16>
    %cst_86 = arith.constant dense<0.000000e+00> : vector<5x64xf32>
    %133 = tpu.matmul %132, %5, %cst_86 {dimension_numbers = #tpu.dot_dimension_numbers<[1], [0], [0], [1], [0, 0, 1, 1], [], []>} : vector<5x320xbf16>, vector<320x64xbf16>, vector<5x64xf32> -> vector<5x64xf32>
    %134 = vector.extract_strided_slice %133 {offsets = [0, 0], sizes = [5, 32], strides = [1, 1]} : vector<5x64xf32> to vector<5x32xf32>
    %135 = vector.extract_strided_slice %133 {offsets = [0, 32], sizes = [5, 32], strides = [1, 1]} : vector<5x64xf32> to vector<5x32xf32>
    %136 = tpu.concatenate %134, %135 in 0 : vector<5x32xf32>, vector<5x32xf32> -> vector<10x32xf32>
    %137 = arith.truncf %136 : vector<10x32xf32> to vector<10x32xbf16>
    %cst_87 = arith.constant dense<0.000000e+00> : vector<16x32xf32>
    %138 = tpu.matmul %3, %137, %cst_87 {dimension_numbers = #tpu.dot_dimension_numbers<[1], [0], [0], [1], [0, 0, 1, 1], [], []>} : vector<16x10xbf16>, vector<10x32xbf16>, vector<16x32xf32> -> vector<16x32xf32>
    %139 = arith.truncf %138 : vector<16x32xf32> to vector<16x32xbf16>
    %c3_88 = arith.constant 3 : index
    %c0_89 = arith.constant 0 : index
    %c0_90 = arith.constant 0 : index
    %140 = vector.load %arg9[%c3_88, %c0_89, %c0_90] : memref<4x32x64xbf16, #tpu.memory_space<vmem>>, vector<1x32x64xbf16>
    %141 = vector.shape_cast %140 : vector<1x32x64xbf16> to vector<32x64xbf16>
    %cst_91 = arith.constant dense<0.000000e+00> : vector<16x64xf32>
    %142 = tpu.matmul %139, %141, %cst_91 {dimension_numbers = #tpu.dot_dimension_numbers<[1], [0], [0], [1], [0, 0, 1, 1], [], []>} : vector<16x32xbf16>, vector<32x64xbf16>, vector<16x64xf32> -> vector<16x64xf32>
    %c3_92 = arith.constant 3 : index
    %c0_93 = arith.constant 0 : index
    %c0_94 = arith.constant 0 : index
    %143 = vector.load %arg10[%c3_92, %c0_93, %c0_94] : memref<4x1x64xf32, #tpu.memory_space<vmem>>, vector<1x1x64xf32>
    %144 = vector.shape_cast %143 : vector<1x1x64xf32> to vector<1x64xf32>
    %145 = vector.broadcast %144 : vector<1x64xf32> to vector<16x64xf32>
    %146 = arith.addf %142, %145 : vector<16x64xf32>
    %cst_95 = arith.constant 0.000000e+00 : f32
    %147 = vector.broadcast %cst_95 : f32 to vector<16x64xf32>
    %148 = arith.maximumf %146, %147 : vector<16x64xf32>
    %149 = arith.truncf %148 : vector<16x64xf32> to vector<16x64xbf16>
    %c3_96 = arith.constant 3 : index
    %c0_97 = arith.constant 0 : index
    %c0_98 = arith.constant 0 : index
    %150 = vector.load %arg11[%c3_96, %c0_97, %c0_98] : memref<4x64x32xbf16, #tpu.memory_space<vmem>>, vector<1x64x32xbf16>
    %151 = vector.shape_cast %150 : vector<1x64x32xbf16> to vector<64x32xbf16>
    %cst_99 = arith.constant dense<0.000000e+00> : vector<16x32xf32>
    %152 = tpu.matmul %149, %151, %cst_99 {dimension_numbers = #tpu.dot_dimension_numbers<[1], [0], [0], [1], [0, 0, 1, 1], [], []>} : vector<16x64xbf16>, vector<64x32xbf16>, vector<16x32xf32> -> vector<16x32xf32>
    %c3_100 = arith.constant 3 : index
    %c0_101 = arith.constant 0 : index
    %c0_102 = arith.constant 0 : index
    %153 = vector.load %arg12[%c3_100, %c0_101, %c0_102] : memref<4x1x32xf32, #tpu.memory_space<vmem>>, vector<1x1x32xf32>
    %154 = vector.shape_cast %153 : vector<1x1x32xf32> to vector<1x32xf32>
    %155 = vector.broadcast %154 : vector<1x32xf32> to vector<16x32xf32>
    %156 = arith.addf %152, %155 : vector<16x32xf32>
    %157 = arith.truncf %156 : vector<16x32xf32> to vector<16x32xbf16>
    %cst_103 = arith.constant dense<0.000000e+00> : vector<16x128xf32>
    %158 = tpu.matmul %157, %6, %cst_103 {dimension_numbers = #tpu.dot_dimension_numbers<[1], [0], [0], [1], [0, 0, 1, 1], [], []>} : vector<16x32xbf16>, vector<32x128xbf16>, vector<16x128xf32> -> vector<16x128xf32>
    %159 = vector.broadcast %7 : vector<1x128xf32> to vector<16x128xf32>
    %160 = arith.addf %158, %159 : vector<16x128xf32>
    %c0_104 = arith.constant 0 : index
    %c0_105 = arith.constant 0 : index
    %c0_106 = arith.constant 0 : index
    %161 = vector.load %arg15[%c0_104, %c0_105, %c0_106] : memref<1x16x128xf32, #tpu.memory_space<vmem>>, vector<1x16x128xf32>
    %162 = vector.shape_cast %161 : vector<1x16x128xf32> to vector<16x128xf32>
    %163 = vector.shape_cast %160 : vector<16x128xf32> to vector<1x16x128xf32>
    tpu.vector_store %arg15[%c0_104, %c0_105, %c0_106], %163 {strides = array<i32>} : memref<1x16x128xf32, #tpu.memory_space<vmem>>, vector<1x16x128xf32>,
    return
  }
  func.func @transform_0(%arg0: i32) -> (i32, i32, i32) {
    %c0_i32 = arith.constant 0 : i32
    %c0_i32_0 = arith.constant 0 : i32
    %c0_i32_1 = arith.constant 0 : i32
    return %arg0, %c0_i32, %c0_i32_0 : i32, i32, i32
  }
  func.func @transform_1(%arg0: i32) -> (i32, i32) {
    %c0_i32 = arith.constant 0 : i32
    %c0_i32_0 = arith.constant 0 : i32
    %c0_i32_1 = arith.constant 0 : i32
    return %c0_i32, %c0_i32_0 : i32, i32
  }
  func.func @transform_2(%arg0: i32) -> (i32, i32) {
    %c0_i32 = arith.constant 0 : i32
    %c0_i32_0 = arith.constant 0 : i32
    %c0_i32_1 = arith.constant 0 : i32
    return %c0_i32, %c0_i32_0 : i32, i32
  }
  func.func @transform_3(%arg0: i32) -> (i32, i32) {
    %c0_i32 = arith.constant 0 : i32
    %c0_i32_0 = arith.constant 0 : i32
    %c0_i32_1 = arith.constant 0 : i32
    return %c0_i32, %c0_i32_0 : i32, i32
  }
  func.func @transform_4(%arg0: i32) -> (i32, i32) {
    %c0_i32 = arith.constant 0 : i32
    %c0_i32_0 = arith.constant 0 : i32
    %c0_i32_1 = arith.constant 0 : i32
    return %c0_i32, %c0_i32_0 : i32, i32
  }
  func.func @transform_5(%arg0: i32) -> (i32, i32, i32) {
    %c0_i32 = arith.constant 0 : i32
    %c0_i32_0 = arith.constant 0 : i32
    %c0_i32_1 = arith.constant 0 : i32
    %c0_i32_2 = arith.constant 0 : i32
    return %c0_i32, %c0_i32_0, %c0_i32_1 : i32, i32, i32
  }
  func.func @transform_6(%arg0: i32) -> (i32, i32) {
    %c0_i32 = arith.constant 0 : i32
    %c0_i32_0 = arith.constant 0 : i32
    %c0_i32_1 = arith.constant 0 : i32
    return %c0_i32, %c0_i32_0 : i32, i32
  }
  func.func @transform_7(%arg0: i32) -> (i32, i32) {
    %c0_i32 = arith.constant 0 : i32
    %c0_i32_0 = arith.constant 0 : i32
    %c0_i32_1 = arith.constant 0 : i32
    return %c0_i32, %c0_i32_0 : i32, i32
  }
  func.func @transform_8(%arg0: i32) -> (i32, i32, i32) {
    %c0_i32 = arith.constant 0 : i32
    %c0_i32_0 = arith.constant 0 : i32
    %c0_i32_1 = arith.constant 0 : i32
    %c0_i32_2 = arith.constant 0 : i32
    return %c0_i32, %c0_i32_0, %c0_i32_1 : i32, i32, i32
  }
  func.func @transform_9(%arg0: i32) -> (i32, i32, i32) {
    %c0_i32 = arith.constant 0 : i32
    %c0_i32_0 = arith.constant 0 : i32
    %c0_i32_1 = arith.constant 0 : i32
    %c0_i32_2 = arith.constant 0 : i32
    return %c0_i32, %c0_i32_0, %c0_i32_1 : i32, i32, i32
  }
  func.func @transform_10(%arg0: i32) -> (i32, i32, i32) {
    %c0_i32 = arith.constant 0 : i32
    %c0_i32_0 = arith.constant 0 : i32
    %c0_i32_1 = arith.constant 0 : i32
    %c0_i32_2 = arith.constant 0 : i32
    return %c0_i32, %c0_i32_0, %c0_i32_1 : i32, i32, i32
  }
  func.func @transform_11(%arg0: i32) -> (i32, i32, i32) {
    %c0_i32 = arith.constant 0 : i32
    %c0_i32_0 = arith.constant 0 : i32
    %c0_i32_1 = arith.constant 0 : i32
    %c0_i32_2 = arith.constant 0 : i32
    return %c0_i32, %c0_i32_0, %c0_i32_1 : i32, i32, i32
  }
  func.func @transform_12(%arg0: i32) -> (i32, i32) {
    %c0_i32 = arith.constant 0 : i32
    %c0_i32_0 = arith.constant 0 : i32
    %c0_i32_1 = arith.constant 0 : i32
    return %c0_i32, %c0_i32_0 : i32, i32
  }
  func.func @transform_13(%arg0: i32) -> (i32, i32) {
    %c0_i32 = arith.constant 0 : i32
    %c0_i32_0 = arith.constant 0 : i32
    %c0_i32_1 = arith.constant 0 : i32
    return %c0_i32, %c0_i32_0 : i32, i32
  }
  func.func @transform_14(%arg0: i32) -> (i32, i32, i32) {
    %c0_i32 = arith.constant 0 : i32
    %c0_i32_0 = arith.constant 0 : i32
    %c0_i32_1 = arith.constant 0 : i32
    return %arg0, %c0_i32, %c0_i32_0 : i32, i32, i32
  }
}

</mosaic_0001>

<llo_original>
// kernel: fno_forward_pallas.1
$region0: #{fno_forward_pallas.1}
  #allocation0 [shape = 'u32[]', space=smem, size = 0x4, offset = 0x4, fixed_abs, tag = 'smem constant byte address 0x4 - core index']
  #allocation1 [shape = 'u32[72,128]{1,0:T(1,128)}', space=vmem, size = 0x9000, scoped, tag = 'internal scratch']
  %s0 = inlined_call_operand.vmem [shape: f32[2,16,12], index: 0, kind: input, shape index: {}]
  %s1 = inlined_call_operand.hbm [shape: bf16[12,32], index: 1, kind: input, shape index: {}]
  %s2 = inlined_call_operand.hbm [shape: f32[1,32], index: 2, kind: input, shape index: {}]
  %s3 = inlined_call_operand.hbm [shape: bf16[10,16], index: 3, kind: input, shape index: {}]
  %s4 = inlined_call_operand.hbm [shape: bf16[16,10], index: 4, kind: input, shape index: {}]
  %s5 = inlined_call_operand.vmem [shape: bf16[4,64,320], index: 5, kind: input, shape index: {}]
  %s6 = inlined_call_operand.hbm [shape: f32[5,320], index: 6, kind: input, shape index: {}]
  %s7 = inlined_call_operand.vmem [shape: bf16[320,64], index: 7, kind: input, shape index: {}]
  %s8 = inlined_call_operand.vmem [shape: bf16[4,32,64], index: 8, kind: input, shape index: {}]
  %s9 = inlined_call_operand.hbm [shape: f32[4,1,64], index: 9, kind: input, shape index: {}]
  %s10 = inlined_call_operand.vmem [shape: bf16[4,64,32], index: 10, kind: input, shape index: {}]
  %s11 = inlined_call_operand.hbm [shape: f32[4,1,32], index: 11, kind: input, shape index: {}]
  %s12 = inlined_call_operand.hbm [shape: bf16[32,128], index: 12, kind: input, shape index: {}]
  %s13 = inlined_call_operand.hbm [shape: f32[1,128], index: 13, kind: input, shape index: {}]
  %s14 = inlined_call_operand.vmem [shape: f32[2,16,128], index: 14, kind: output, shape index: {}]
  %s15 = sld [smem:[#allocation0]]
  $region125: #{fno_forward_pallas.1} parent=0
    _
  %s17 = ssub.s32 1, %s15
  %s18 = scalar_select 0, %s17, %s15
  $region1: #{fno_forward_pallas.1} parent=0
    #allocation2 [shape = 'u8[4096]{0}', space=vmem, size = 0x1000, scoped, tag = 'input window, operand 1, single buffered']
    #allocation3 [shape = 's32[2]{0}', space=sflag, size = 0x8, scoped, tag = 'scoped memory for fno_forward_pallas.1']
    #allocation4 [shape = 'u8[512]{0}', space=vmem, size = 0x400, scoped, tag = 'input window, operand 2, single buffered']
    #allocation5 [shape = 's32[1]{0}', space=sflag, size = 0x4, scoped, tag = 'scoped memory for fno_forward_pallas.1']
    #allocation6 [shape = 'u8[4096]{0}', space=vmem, size = 0x1000, scoped, tag = 'input window, operand 3, single buffered']
    #allocation7 [shape = 'u8[4096]{0}', space=vmem, size = 0x1000, scoped, tag = 'input window, operand 4, single buffered']
    #allocation8 [shape = 's32[1]{0}', space=sflag, size = 0x4, scoped, tag = 'scoped memory for fno_forward_pallas.1']
    #allocation9 [shape = 'u8[12288]{0}', space=vmem, size = 0x3000, scoped, tag = 'input window, operand 6, single buffered']
    #allocation10 [shape = 'u8[2048]{0}', space=vmem, size = 0x800, scoped, tag = 'input window, operand 9, single buffered']
    #allocation11 [shape = 's32[1]{0}', space=sflag, size = 0x4, scoped, tag = 'scoped memory for fno_forward_pallas.1']
    #allocation12 [shape = 'u8[2048]{0}', space=vmem, size = 0x800, scoped, tag = 'input window, operand 11, single buffered']
    #allocation13 [shape = 'u8[8192]{0}', space=vmem, size = 0x2000, scoped, tag = 'input window, operand 12, single buffered']
    #allocation14 [shape = 's32[1]{0}', space=sflag, size = 0x4, scoped, tag = 'scoped memory for fno_forward_pallas.1']
    #allocation15 [shape = 'u8[512]{0}', space=vmem, size = 0x400, scoped, tag = 'input window, operand 13, single buffered']
    %19 = vsyncpa [#allocation3], 0
    %20 = vsyncpa [#allocation5], 0
    %21 = vsyncpa [#allocation8], 0
    %22 = vsyncpa [#allocation11], 0
    %23 = vsyncpa [#allocation14], 0
    loop: start=0, step=1, limit=4
    $region2: #{fno_forward_pallas.1} parent=1 // loop_pre_header
      _
    $region3: #{fno_forward_pallas.1} parent=1 // loop_header
      %s25 = sphi 0, %s29
      %p26 = scmp.ge.s32.totalorder %s25, 4
      %s35 = sphi 0, %s37
      %s38 = sphi 0, %s35
      %s39 = sphi 0, %s38
      %s55 = sphi 0, %s39
      %s59 = sphi 0, %s59
      %s61 = sphi 0, %s59
      %s62 = sphi 0, %s61
      %s76 = sphi 0, %s62
      %s80 = sphi 0, %s80
      %s82 = sphi 0, %s80
      %s83 = sphi 0, %s82
      %s97 = sphi 0, %s83
      %s101 = sphi 0, %s101
      %s103 = sphi 0, %s101
      %s104 = sphi 0, %s103
      %s118 = sphi 0, %s104
      %s122 = sphi 0, %s122
      %s124 = sphi 0, %s122
      %s125 = sphi 0, %s124
      %s139 = sphi 0, %s125
      %s143 = sphi 0, %s143
      %s145 = sphi 0, %s143
      %s146 = sphi 0, %s145
      %s160 = sphi 0, %s146
      %s164 = sphi 0, %s164
      %s166 = sphi 0, %s164
      %s167 = sphi 0, %s166
      %s181 = sphi 0, %s167
      %s185 = sphi 0, %s185
      %s187 = sphi 0, %s185
      %s188 = sphi 0, %s187
      %s202 = sphi 0, %s188
      %s206 = sphi 0, %s206
      %s208 = sphi 0, %s206
      %s209 = sphi 0, %s208
      %s223 = sphi 0, %s209
      %s227 = sphi 0, %s227
      %s229 = sphi 0, %s227
      %s230 = sphi 0, %s229
      %s244 = sphi 0, %s230
      %s248 = sphi 0, %s248
      %s250 = sphi 0, %s248
      %s251 = sphi 0, %s250
      %s265 = sphi 0, %s251
      %s269 = sphi 0, %s269
      %s271 = sphi 0, %s269
      %s272 = sphi 0, %s271
      %s286 = sphi 0, %s272
      %s290 = sphi 0, %s290
      %s292 = sphi 0, %s290
      %s293 = sphi 0, %s292
      %s307 = sphi 0, %s293
      %s311 = sphi 0, %s311
      %s313 = sphi 0, %s311
      %s314 = sphi 0, %s313
      %s328 = sphi 0, %s314
      %s334 = sphi 0, %s336
      %s337 = sphi 0, %s334
      %s338 = sphi 0, %s337
      %s354 = sphi 0, %s338
    $region4: #{fno_forward_pallas.1} parent=1 // loop_header_branch
      %28 = sbr.rel (%p26) target = $region8
    $region5: #{fno_forward_pallas.1} parent=1 // loop_body
      %s30 = ssub.s32 %s25, 1
      %s31 = ssub.s32 %s25, 2
      %s32 = sadd.s32 %s25, 1
      %s33 = ssub.s32 %s25, %s32
      %p34 = scmp.eq.s32.totalorder %s33, 0
      %s36 = sadd.s32 %s35, 1
      %s37 = scalar_select %p34, %s35, %s36
      %p40 = pneg %p34
      %p41 = scmp.eq.s32.totalorder %s25, 1
      %p42 = por %p40, %p41
      %p43 = scmp.ne.s32.totalorder %s35, %s38
      %p44 = scmp.eq.s32.totalorder %s25, 0
      %p45 = por %p43, %p44
      %p46 = scmp.ne.s32.totalorder %s35, %s38
      %p47 = scmp.eq.s32.totalorder %s30, 1
      %p48 = por %p46, %p47
      %p49 = scmp.ne.s32.totalorder %s38, %s39
      %p50 = scmp.eq.s32.totalorder %s30, 0
      %p51 = por %p49, %p50
      %p52 = scmp.ne.s32.totalorder %s38, %s39
      %p53 = scmp.eq.s32.totalorder %s31, 1
      %p54 = por %p52, %p53
      %p56 = scmp.ne.s32.totalorder %s39, %s55
      %p57 = scmp.eq.s32.totalorder %s31, 0
      %p58 = por %p56, %p57
      %s60 = sadd.s32 %s59, 1
      %p63 = scmp.eq.s32.totalorder %s25, 1
      %p64 = scmp.ne.s32.totalorder %s59, %s61
      %p65 = scmp.eq.s32.totalorder %s25, 0
      %p66 = por %p64, %p65
      %p67 = scmp.ne.s32.totalorder %s59, %s61
      %p68 = scmp.eq.s32.totalorder %s30, 1
      %p69 = por %p67, %p68
      %p70 = scmp.ne.s32.totalorder %s61, %s62
      %p71 = scmp.eq.s32.totalorder %s30, 0
      %p72 = por %p70, %p71
      %p73 = scmp.ne.s32.totalorder %s61, %s62
      %p74 = scmp.eq.s32.totalorder %s31, 1
      %p75 = por %p73, %p74
      %p77 = scmp.ne.s32.totalorder %s62, %s76
      %p78 = scmp.eq.s32.totalorder %s31, 0
      %p79 = por %p77, %p78
      %s81 = sadd.s32 %s80, 1
      %p84 = scmp.eq.s32.totalorder %s25, 1
      %p85 = scmp.ne.s32.totalorder %s80, %s82
      %p86 = scmp.eq.s32.totalorder %s25, 0
      %p87 = por %p85, %p86
      %p88 = scmp.ne.s32.totalorder %s80, %s82
      %p89 = scmp.eq.s32.totalorder %s30, 1
      %p90 = por %p88, %p89
      %p91 = scmp.ne.s32.totalorder %s82, %s83
      %p92 = scmp.eq.s32.totalorder %s30, 0
      %p93 = por %p91, %p92
      %p94 = scmp.ne.s32.totalorder %s82, %s83
      %p95 = scmp.eq.s32.totalorder %s31, 1
      %p96 = por %p94, %p95
      %p98 = scmp.ne.s32.totalorder %s83, %s97
      %p99 = scmp.eq.s32.totalorder %s31, 0
      %p100 = por %p98, %p99
      %s102 = sadd.s32 %s101, 1
      %p105 = scmp.eq.s32.totalorder %s25, 1
      %p106 = scmp.ne.s32.totalorder %s101, %s103
      %p107 = scmp.eq.s32.totalorder %s25, 0
      %p108 = por %p106, %p107
      %p109 = scmp.ne.s32.totalorder %s101, %s103
      %p110 = scmp.eq.s32.totalorder %s30, 1
      %p111 = por %p109, %p110
      %p112 = scmp.ne.s32.totalorder %s103, %s104
      %p113 = scmp.eq.s32.totalorder %s30, 0
      %p114 = por %p112, %p113
      %p115 = scmp.ne.s32.totalorder %s103, %s104
      %p116 = scmp.eq.s32.totalorder %s31, 1
      %p117 = por %p115, %p116
      %p119 = scmp.ne.s32.totalorder %s104, %s118
      %p120 = scmp.eq.s32.totalorder %s31, 0
      %p121 = por %p119, %p120
      %s123 = sadd.s32 %s122, 1
      %p126 = scmp.eq.s32.totalorder %s25, 1
      %p127 = scmp.ne.s32.totalorder %s122, %s124
      %p128 = scmp.eq.s32.totalorder %s25, 0
      %p129 = por %p127, %p128
      %p130 = scmp.ne.s32.totalorder %s122, %s124
      %p131 = scmp.eq.s32.totalorder %s30, 1
      %p132 = por %p130, %p131
      %p133 = scmp.ne.s32.totalorder %s124, %s125
      %p134 = scmp.eq.s32.totalorder %s30, 0
      %p135 = por %p133, %p134
      %p136 = scmp.ne.s32.totalorder %s124, %s125
      %p137 = scmp.eq.s32.totalorder %s31, 1
      %p138 = por %p136, %p137
      %p140 = scmp.ne.s32.totalorder %s125, %s139
      %p141 = scmp.eq.s32.totalorder %s31, 0
      %p142 = por %p140, %p141
      %s144 = sadd.s32 %s143, 1
      %p147 = scmp.eq.s32.totalorder %s25, 1
      %p148 = scmp.ne.s32.totalorder %s143, %s145
      %p149 = scmp.eq.s32.totalorder %s25, 0
      %p150 = por %p148, %p149
      %p151 = scmp.ne.s32.totalorder %s143, %s145
      %p152 = scmp.eq.s32.totalorder %s30, 1
      %p153 = por %p151, %p152
      %p154 = scmp.ne.s32.totalorder %s145, %s146
      %p155 = scmp.eq.s32.totalorder %s30, 0
      %p156 = por %p154, %p155
      %p157 = scmp.ne.s32.totalorder %s145, %s146
      %p158 = scmp.eq.s32.totalorder %s31, 1
      %p159 = por %p157, %p158
      %p161 = scmp.ne.s32.totalorder %s146, %s160
      %p162 = scmp.eq.s32.totalorder %s31, 0
      %p163 = por %p161, %p162
      %s165 = sadd.s32 %s164, 1
      %p168 = scmp.eq.s32.totalorder %s25, 1
      %p169 = scmp.ne.s32.totalorder %s164, %s166
      %p170 = scmp.eq.s32.totalorder %s25, 0
      %p171 = por %p169, %p170
      %p172 = scmp.ne.s32.totalorder %s164, %s166
      %p173 = scmp.eq.s32.totalorder %s30, 1
      %p174 = por %p172, %p173
      %p175 = scmp.ne.s32.totalorder %s166, %s167
      %p176 = scmp.eq.s32.totalorder %s30, 0
      %p177 = por %p175, %p176
      %p178 = scmp.ne.s32.totalorder %s166, %s167
      %p179 = scmp.eq.s32.totalorder %s31, 1
      %p180 = por %p178, %p179
      %p182 = scmp.ne.s32.totalorder %s167, %s181
      %p183 = scmp.eq.s32.totalorder %s31, 0
      %p184 = por %p182, %p183
      %s186 = sadd.s32 %s185, 1
      %p189 = scmp.eq.s32.totalorder %s25, 1
      %p190 = scmp.ne.s32.totalorder %s185, %s187
      %p191 = scmp.eq.s32.totalorder %s25, 0
      %p192 = por %p190, %p191
      %p193 = scmp.ne.s32.totalorder %s185, %s187
      %p194 = scmp.eq.s32.totalorder %s30, 1
      %p195 = por %p193, %p194
      %p196 = scmp.ne.s32.totalorder %s187, %s188
      %p197 = scmp.eq.s32.totalorder %s30, 0
      %p198 = por %p196, %p197
      %p199 = scmp.ne.s32.totalorder %s187, %s188
      %p200 = scmp.eq.s32.totalorder %s31, 1
      %p201 = por %p199, %p200
      %p203 = scmp.ne.s32.totalorder %s188, %s202
      %p204 = scmp.eq.s32.totalorder %s31, 0
      %p205 = por %p203, %p204
      %s207 = sadd.s32 %s206, 1
      %p210 = scmp.eq.s32.totalorder %s25, 1
      %p211 = scmp.ne.s32.totalorder %s206, %s208
      %p212 = scmp.eq.s32.totalorder %s25, 0
      %p213 = por %p211, %p212
      %p214 = scmp.ne.s32.totalorder %s206, %s208
      %p215 = scmp.eq.s32.totalorder %s30, 1
      %p216 = por %p214, %p215
      %p217 = scmp.ne.s32.totalorder %s208, %s209
      %p218 = scmp.eq.s32.totalorder %s30, 0
      %p219 = por %p217, %p218
      %p220 = scmp.ne.s32.totalorder %s208, %s209
      %p221 = scmp.eq.s32.totalorder %s31, 1
      %p222 = por %p220, %p221
      %p224 = scmp.ne.s32.totalorder %s209, %s223
      %p225 = scmp.eq.s32.totalorder %s31, 0
      %p226 = por %p224, %p225
      %s228 = sadd.s32 %s227, 1
      %p231 = scmp.eq.s32.totalorder %s25, 1
      %p232 = scmp.ne.s32.totalorder %s227, %s229
      %p233 = scmp.eq.s32.totalorder %s25, 0
      %p234 = por %p232, %p233
      %p235 = scmp.ne.s32.totalorder %s227, %s229
      %p236 = scmp.eq.s32.totalorder %s30, 1
      %p237 = por %p235, %p236
      %p238 = scmp.ne.s32.totalorder %s229, %s230
      %p239 = scmp.eq.s32.totalorder %s30, 0
      %p240 = por %p238, %p239
      %p241 = scmp.ne.s32.totalorder %s229, %s230
      %p242 = scmp.eq.s32.totalorder %s31, 1
      %p243 = por %p241, %p242
      %p245 = scmp.ne.s32.totalorder %s230, %s244
      %p246 = scmp.eq.s32.totalorder %s31, 0
      %p247 = por %p245, %p246
      %s249 = sadd.s32 %s248, 1
      %p252 = scmp.eq.s32.totalorder %s25, 1
      %p253 = scmp.ne.s32.totalorder %s248, %s250
      %p254 = scmp.eq.s32.totalorder %s25, 0
      %p255 = por %p253, %p254
      %p256 = scmp.ne.s32.totalorder %s248, %s250
      %p257 = scmp.eq.s32.totalorder %s30, 1
      %p258 = por %p256, %p257
      %p259 = scmp.ne.s32.totalorder %s250, %s251
      %p260 = scmp.eq.s32.totalorder %s30, 0
      %p261 = por %p259, %p260
      %p262 = scmp.ne.s32.totalorder %s250, %s251
      %p263 = scmp.eq.s32.totalorder %s31, 1
      %p264 = por %p262, %p263
      %p266 = scmp.ne.s32.totalorder %s251, %s265
      %p267 = scmp.eq.s32.totalorder %s31, 0
      %p268 = por %p266, %p267
      %s270 = sadd.s32 %s269, 1
      %p273 = scmp.eq.s32.totalorder %s25, 1
      %p274 = scmp.ne.s32.totalorder %s269, %s271
      %p275 = scmp.eq.s32.totalorder %s25, 0
      %p276 = por %p274, %p275
      %p277 = scmp.ne.s32.totalorder %s269, %s271
      %p278 = scmp.eq.s32.totalorder %s30, 1
      %p279 = por %p277, %p278
      %p280 = scmp.ne.s32.totalorder %s271, %s272
      %p281 = scmp.eq.s32.totalorder %s30, 0
      %p282 = por %p280, %p281
      %p283 = scmp.ne.s32.totalorder %s271, %s272
      %p284 = scmp.eq.s32.totalorder %s31, 1
      %p285 = por %p283, %p284
      %p287 = scmp.ne.s32.totalorder %s272, %s286
      %p288 = scmp.eq.s32.totalorder %s31, 0
      %p289 = por %p287, %p288
      %s291 = sadd.s32 %s290, 1
      %p294 = scmp.eq.s32.totalorder %s25, 1
      %p295 = scmp.ne.s32.totalorder %s290, %s292
      %p296 = scmp.eq.s32.totalorder %s25, 0
      %p297 = por %p295, %p296
      %p298 = scmp.ne.s32.totalorder %s290, %s292
      %p299 = scmp.eq.s32.totalorder %s30, 1
      %p300 = por %p298, %p299
      %p301 = scmp.ne.s32.totalorder %s292, %s293
      %p302 = scmp.eq.s32.totalorder %s30, 0
      %p303 = por %p301, %p302
      %p304 = scmp.ne.s32.totalorder %s292, %s293
      %p305 = scmp.eq.s32.totalorder %s31, 1
      %p306 = por %p304, %p305
      %p308 = scmp.ne.s32.totalorder %s293, %s307
      %p309 = scmp.eq.s32.totalorder %s31, 0
      %p310 = por %p308, %p309
      %s312 = sadd.s32 %s311, 1
      %p315 = scmp.eq.s32.totalorder %s25, 1
      %p316 = scmp.ne.s32.totalorder %s311, %s313
      %p317 = scmp.eq.s32.totalorder %s25, 0
      %p318 = por %p316, %p317
      %p319 = scmp.ne.s32.totalorder %s311, %s313
      %p320 = scmp.eq.s32.totalorder %s30, 1
      %p321 = por %p319, %p320
      %p322 = scmp.ne.s32.totalorder %s313, %s314
      %p323 = scmp.eq.s32.totalorder %s30, 0
      %p324 = por %p322, %p323
      %p325 = scmp.ne.s32.totalorder %s313, %s314
      %p326 = scmp.eq.s32.totalorder %s31, 1
      %p327 = por %p325, %p326
      %p329 = scmp.ne.s32.totalorder %s314, %s328
      %p330 = scmp.eq.s32.totalorder %s31, 0
      %p331 = por %p329, %p330
      %s332 = ssub.s32 %s25, %s32
      %p333 = scmp.eq.s32.totalorder %s332, 0
      %s335 = sadd.s32 %s334, 1
      %s336 = scalar_select %p333, %s334, %s335
      %p339 = pneg %p333
      %p340 = scmp.eq.s32.totalorder %s25, 1
      %p341 = por %p339, %p340
      %p342 = scmp.ne.s32.totalorder %s334, %s337
      %p343 = scmp.eq.s32.totalorder %s25, 0
      %p344 = por %p342, %p343
      %p345 = scmp.ne.s32.totalorder %s334, %s337
      %p346 = scmp.eq.s32.totalorder %s30, 1
      %p347 = por %p345, %p346
      %p348 = scmp.ne.s32.totalorder %s337, %s338
      %p349 = scmp.eq.s32.totalorder %s30, 0
      %p350 = por %p348, %p349
      %p351 = scmp.ne.s32.totalorder %s337, %s338
      %p352 = scmp.eq.s32.totalorder %s31, 1
      %p353 = por %p351, %p352
      %p355 = scmp.ne.s32.totalorder %s338, %s354
      %p356 = scmp.eq.s32.totalorder %s31, 0
      %p357 = por %p355, %p356
      %p358 = scmp.le.s32.totalorder 1, %s25
      %p359 = scmp.lt.s32.totalorder %s25, 3
      %p360 = pnand %p358, %p359
      %p361 = pneg %p360
      // Predicated region
      $region9: #{fno_forward_pallas.1} parent=5 // pred_check
        _
      $region10: #{fno_forward_pallas.1} parent=5 // pred_check_branch
        %363 = sbr.rel (%p360) target = $region12
      $region11: #{fno_forward_pallas.1} parent=5 // pred_region
        %s364 = ssub.s32 %s25, 1
        // Predicated region
        $region13: #{fno_forward_pallas.1} parent=11 // pred_check
          %p365 = pneg %p72
        $region14: #{fno_forward_pallas.1} parent=11 // pred_check_branch
          %367 = sbr.rel (%p365) target = $region16
        $region15: #{fno_forward_pallas.1} parent=11 // pred_region
          %369 = vsyncadd [#allocation3], 0
          %s370 = sshll.u32 %s1, 4
          %s371 = int_to_ptr.hbm [resolvable:$true] %s370
          %s372 = sshll.u32 [#allocation2], 4
          %s373 = int_to_ptr.vmem [resolvable:$true] %s372
          %378 = dma.hbm_to_vmem [thread:$0]  %s371, 128, %s373, [#allocation3], 64, 64, 4
        $region16: #{fno_forward_pallas.1} parent=11 // pred_fallthru
          _
        // Predicated region
        $region17: #{fno_forward_pallas.1} parent=11 // pred_check
          %p379 = pneg %p93
        $region18: #{fno_forward_pallas.1} parent=11 // pred_check_branch
          %381 = sbr.rel (%p379) target = $region20
        $region19: #{fno_forward_pallas.1} parent=11 // pred_region
          %383 = vsyncadd [#allocation5], 0
          %s385 = sshll.u32 %s2, 4
          %s386 = int_to_ptr.hbm [resolvable:$true] %s385
          %s387 = sshll.u32 [#allocation4], 4
          %s388 = int_to_ptr.vmem [resolvable:$true] %s387
          %390 = dma.hbm_to_vmem [thread:$0]  %s386, 16, %s388, [#allocation5]
        $region20: #{fno_forward_pallas.1} parent=11 // pred_fallthru
          _
        // Predicated region
        $region21: #{fno_forward_pallas.1} parent=11 // pred_check
          %p391 = pneg %p114
        $region22: #{fno_forward_pallas.1} parent=11 // pred_check_branch
          %393 = sbr.rel (%p391) target = $region24
        $region23: #{fno_forward_pallas.1} parent=11 // pred_region
          %395 = vsyncadd [#allocation5], 0
          %s396 = sshll.u32 %s3, 4
          %s397 = int_to_ptr.hbm [resolvable:$true] %s396
          %s398 = sshll.u32 [#allocation6], 4
          %s399 = int_to_ptr.vmem [resolvable:$true] %s398
          %404 = dma.hbm_to_vmem [thread:$0]  %s397, 128, %s399, [#allocation5], 64, 64, 4
        $region24: #{fno_forward_pallas.1} parent=11 // pred_fallthru
          _
        // Predicated region
        $region25: #{fno_forward_pallas.1} parent=11 // pred_check
          %p405 = pneg %p135
        $region26: #{fno_forward_pallas.1} parent=11 // pred_check_branch
          %407 = sbr.rel (%p405) target = $region28
        $region27: #{fno_forward_pallas.1} parent=11 // pred_region
          %409 = vsyncadd [#allocation8], 0
          %s410 = sshll.u32 %s4, 4
          %s411 = int_to_ptr.hbm [resolvable:$true] %s410
          %s412 = sshll.u32 [#allocation7], 4
          %s413 = int_to_ptr.vmem [resolvable:$true] %s412
          %418 = dma.hbm_to_vmem [thread:$0]  %s411, 128, %s413, [#allocation8], 64, 64, 4
        $region28: #{fno_forward_pallas.1} parent=11 // pred_fallthru
          _
        // Predicated region
        $region29: #{fno_forward_pallas.1} parent=11 // pred_check
          %p419 = pneg %p156
        $region30: #{fno_forward_pallas.1} parent=11 // pred_check_branch
          %421 = sbr.rel (%p419) target = $region32
        $region31: #{fno_forward_pallas.1} parent=11 // pred_region
          _
        $region32: #{fno_forward_pallas.1} parent=11 // pred_fallthru
          _
        // Predicated region
        $region33: #{fno_forward_pallas.1} parent=11 // pred_check
          %p422 = pneg %p177
        $region34: #{fno_forward_pallas.1} parent=11 // pred_check_branch
          %424 = sbr.rel (%p422) target = $region36
        $region35: #{fno_forward_pallas.1} parent=11 // pred_region
          %426 = vsyncadd [#allocation8], 0
          %s428 = sshll.u32 %s6, 4
          %s429 = int_to_ptr.hbm [resolvable:$true] %s428
          %s430 = sshll.u32 [#allocation9], 4
          %s431 = int_to_ptr.vmem [resolvable:$true] %s430
          %433 = dma.hbm_to_vmem [thread:$0]  %s429, 384, %s431, [#allocation8]
        $region36: #{fno_forward_pallas.1} parent=11 // pred_fallthru
          _
        // Predicated region
        $region37: #{fno_forward_pallas.1} parent=11 // pred_check
          %p434 = pneg %p198
        $region38: #{fno_forward_pallas.1} parent=11 // pred_check_branch
          %436 = sbr.rel (%p434) target = $region40
        $region39: #{fno_forward_pallas.1} parent=11 // pred_region
          _
        $region40: #{fno_forward_pallas.1} parent=11 // pred_fallthru
          _
        // Predicated region
        $region41: #{fno_forward_pallas.1} parent=11 // pred_check
          %p437 = pneg %p219
        $region42: #{fno_forward_pallas.1} parent=11 // pred_check_branch
          %439 = sbr.rel (%p437) target = $region44
        $region43: #{fno_forward_pallas.1} parent=11 // pred_region
          _
        $region44: #{fno_forward_pallas.1} parent=11 // pred_fallthru
          _
        // Predicated region
        $region45: #{fno_forward_pallas.1} parent=11 // pred_check
          %p440 = pneg %p240
        $region46: #{fno_forward_pallas.1} parent=11 // pred_check_branch
          %442 = sbr.rel (%p440) target = $region48
        $region47: #{fno_forward_pallas.1} parent=11 // pred_region
          %444 = vsyncadd [#allocation11], 0
          %s445 = sshll.u32 %s9, 4
          %s446 = int_to_ptr.hbm [resolvable:$true] %s445
          %s447 = sshll.u32 [#allocation10], 4
          %s448 = int_to_ptr.vmem [resolvable:$true] %s447
          %453 = dma.hbm_to_vmem [thread:$0]  %s446, 64, %s448, [#allocation11], 16, 16, 1
        $region48: #{fno_forward_pallas.1} parent=11 // pred_fallthru
          _
        // Predicated region
        $region49: #{fno_forward_pallas.1} parent=11 // pred_check
          %p454 = pneg %p261
        $region50: #{fno_forward_pallas.1} parent=11 // pred_check_branch
          %456 = sbr.rel (%p454) target = $region52
        $region51: #{fno_forward_pallas.1} parent=11 // pred_region
          _
        $region52: #{fno_forward_pallas.1} parent=11 // pred_fallthru
          _
        // Predicated region
        $region53: #{fno_forward_pallas.1} parent=11 // pred_check
          %p457 = pneg %p282
        $region54: #{fno_forward_pallas.1} parent=11 // pred_check_branch
          %459 = sbr.rel (%p457) target = $region56
        $region55: #{fno_forward_pallas.1} parent=11 // pred_region
          %461 = vsyncadd [#allocation11], 0
          %s462 = sshll.u32 %s11, 4
          %s463 = int_to_ptr.hbm [resolvable:$true] %s462
          %s464 = sshll.u32 [#allocation12], 4
          %s465 = int_to_ptr.vmem [resolvable:$true] %s464
          %470 = dma.hbm_to_vmem [thread:$0]  %s463, 64, %s465, [#allocation11], 16, 16, 1
        $region56: #{fno_forward_pallas.1} parent=11 // pred_fallthru
          _
        // Predicated region
        $region57: #{fno_forward_pallas.1} parent=11 // pred_check
          %p471 = pneg %p303
        $region58: #{fno_forward_pallas.1} parent=11 // pred_check_branch
          %473 = sbr.rel (%p471) target = $region60
        $region59: #{fno_forward_pallas.1} parent=11 // pred_region
          %475 = vsyncadd [#allocation14], 0
          %s476 = sshll.u32 %s12, 4
          %s477 = int_to_ptr.hbm [resolvable:$true] %s476
          %s478 = sshll.u32 [#allocation13], 4
          %s479 = int_to_ptr.vmem [resolvable:$true] %s478
          %484 = dma.hbm_to_vmem [thread:$0]  %s477, 256, %s479, [#allocation14], 64, 64, 4
        $region60: #{fno_forward_pallas.1} parent=11 // pred_fallthru
          _
        // Predicated region
        $region61: #{fno_forward_pallas.1} parent=11 // pred_check
          %p485 = pneg %p324
        $region62: #{fno_forward_pallas.1} parent=11 // pred_check_branch
          %487 = sbr.rel (%p485) target = $region64
        $region63: #{fno_forward_pallas.1} parent=11 // pred_region
          %489 = vsyncadd [#allocation14], 0
          %s491 = sshll.u32 %s13, 4
          %s492 = int_to_ptr.hbm [resolvable:$true] %s491
          %s493 = sshll.u32 [#allocation15], 4
          %s494 = int_to_ptr.vmem [resolvable:$true] %s493
          %496 = dma.hbm_to_vmem [thread:$0]  %s492, 16, %s494, [#allocation14]
        $region64: #{fno_forward_pallas.1} parent=11 // pred_fallthru
          _
      $region12: #{fno_forward_pallas.1} parent=5 // pred_fallthru
        _
      %p497 = scmp.lt.s32.totalorder %s25, 2
      // Predicated region
      $region65: #{fno_forward_pallas.1} parent=5 // pred_check
        %p498 = pneg %p497
      $region66: #{fno_forward_pallas.1} parent=5 // pred_check_branch
        %500 = sbr.rel (%p498) target = $region68
      $region67: #{fno_forward_pallas.1} parent=5 // pred_region
        // Predicated region
        $region69: #{fno_forward_pallas.1} parent=67 // pred_check
          %p501 = pneg %p45
        $region70: #{fno_forward_pallas.1} parent=67 // pred_check_branch
          %503 = sbr.rel (%p501) target = $region72
        $region71: #{fno_forward_pallas.1} parent=67 // pred_region
          %p504 = scmp.lt.s32.totalorder %s25, 1
          %s505 = scalar_select %p504, %s25, 1
          %s506 = smul.addr %s505, 2
          %s507 = smul.addr %s506, 8
          %s508 = scalar_lea.vmem %s0, %s507
        $region72: #{fno_forward_pallas.1} parent=67 // pred_fallthru
          _
      $region68: #{fno_forward_pallas.1} parent=5 // pred_fallthru
        _
      %p509 = scmp.le.s32.totalorder 1, %s25
      %p510 = scmp.lt.s32.totalorder %s25, 3
      %p511 = pnand %p509, %p510
      %p512 = pneg %p511
      // Predicated region
      $region73: #{fno_forward_pallas.1} parent=5 // pred_check
        _
      $region74: #{fno_forward_pallas.1} parent=5 // pred_check_branch
        %514 = sbr.rel (%p511) target = $region76
      $region75: #{fno_forward_pallas.1} parent=5 // pred_region
        %s515 = ssub.s32 %s25, 1
        // Predicated region
        $region77: #{fno_forward_pallas.1} parent=75 // pred_check
          %p516 = pneg %p72
        $region78: #{fno_forward_pallas.1} parent=75 // pred_check_branch
          %518 = sbr.rel (%p516) target = $region80
        $region79: #{fno_forward_pallas.1} parent=75 // pred_region
          %520 = dma.done [#allocation3], 128
        $region80: #{fno_forward_pallas.1} parent=75 // pred_fallthru
          _
        // Predicated region
        $region81: #{fno_forward_pallas.1} parent=75 // pred_check
          %p521 = pneg %p93
        $region82: #{fno_forward_pallas.1} parent=75 // pred_check_branch
          %523 = sbr.rel (%p521) target = $region84
        $region83: #{fno_forward_pallas.1} parent=75 // pred_region
          %525 = dma.done [#allocation5], 16
        $region84: #{fno_forward_pallas.1} parent=75 // pred_fallthru
          _
        // Predicated region
        $region85: #{fno_forward_pallas.1} parent=75 // pred_check
          %p526 = pneg %p114
        $region86: #{fno_forward_pallas.1} parent=75 // pred_check_branch
          %528 = sbr.rel (%p526) target = $region88
        $region87: #{fno_forward_pallas.1} parent=75 // pred_region
          %530 = dma.done [#allocation5], 128
        $region88: #{fno_forward_pallas.1} parent=75 // pred_fallthru
          _
        // Predicated region
        $region89: #{fno_forward_pallas.1} parent=75 // pred_check
          %p531 = pneg %p135
        $region90: #{fno_forward_pallas.1} parent=75 // pred_check_branch
          %533 = sbr.rel (%p531) target = $region92
        $region91: #{fno_forward_pallas.1} parent=75 // pred_region
          %535 = dma.done [#allocation8], 128
        $region92: #{fno_forward_pallas.1} parent=75 // pred_fallthru
          _
        // Predicated region
        $region93: #{fno_forward_pallas.1} parent=75 // pred_check
          %p536 = pneg %p177
        $region94: #{fno_forward_pallas.1} parent=75 // pred_check_branch
          %538 = sbr.rel (%p536) target = $region96
        $region95: #{fno_forward_pallas.1} parent=75 // pred_region
          %540 = dma.done [#allocation8], 384
        $region96: #{fno_forward_pallas.1} parent=75 // pred_fallthru
          _
        // Predicated region
        $region97: #{fno_forward_pallas.1} parent=75 // pred_check
          %p541 = pneg %p240
        $region98: #{fno_forward_pallas.1} parent=75 // pred_check_branch
          %543 = sbr.rel (%p541) target = $region100
        $region99: #{fno_forward_pallas.1} parent=75 // pred_region
          %545 = dma.done [#allocation11], 64
        $region100: #{fno_forward_pallas.1} parent=75 // pred_fallthru
          _
        // Predicated region
        $region101: #{fno_forward_pallas.1} parent=75 // pred_check
          %p546 = pneg %p282
        $region102: #{fno_forward_pallas.1} parent=75 // pred_check_branch
          %548 = sbr.rel (%p546) target = $region104
        $region103: #{fno_forward_pallas.1} parent=75 // pred_region
          %550 = dma.done [#allocation11], 64
        $region104: #{fno_forward_pallas.1} parent=75 // pred_fallthru
          _
        // Predicated region
        $region105: #{fno_forward_pallas.1} parent=75 // pred_check
          %p551 = pneg %p303
        $region106: #{fno_forward_pallas.1} parent=75 // pred_check_branch
          %553 = sbr.rel (%p551) target = $region108
        $region107: #{fno_forward_pallas.1} parent=75 // pred_region
          %555 = dma.done [#allocation14], 256
        $region108: #{fno_forward_pallas.1} parent=75 // pred_fallthru
          _
        // Predicated region
        $region109: #{fno_forward_pallas.1} parent=75 // pred_check
          %p556 = pneg %p324
        $region110: #{fno_forward_pallas.1} parent=75 // pred_check_branch
          %558 = sbr.rel (%p556) target = $region112
        $region111: #{fno_forward_pallas.1} parent=75 // pred_region
          %560 = dma.done [#allocation14], 16
        $region112: #{fno_forward_pallas.1} parent=75 // pred_fallthru
          _
        %p561 = scmp.lt.s32.totalorder %s30, 1
        %s562 = scalar_select %p561, %s30, 1
        %s563 = smul.addr %s562, 2
        %s564 = smul.addr %s563, 8
        %s565 = scalar_lea.vmem %s0, %s564
        %p566 = pneg %p51
        %p567 = pneg %p48
        %p568 = pneg %p72
        %p569 = pneg %p69
        %p570 = pneg %p93
        %p571 = pneg %p90
        %p572 = pneg %p114
        %p573 = pneg %p111
        %p574 = pneg %p135
        %p575 = pneg %p132
        %p576 = pneg %p156
        %p577 = pneg %p153
        %p578 = pneg %p177
        %p579 = pneg %p174
        %p580 = pneg %p198
        %p581 = pneg %p195
        %p582 = pneg %p219
        %p583 = pneg %p216
        %p584 = pneg %p240
        %p585 = pneg %p237
        %p586 = pneg %p261
        %p587 = pneg %p258
        %p588 = pneg %p282
        %p589 = pneg %p279
        %p590 = pneg %p303
        %p591 = pneg %p300
        %p592 = pneg %p324
        %p593 = pneg %p321
        %p594 = pneg %p350
        %p595 = pneg %p347
        %p596 = scmp.lt.s32.totalorder %s30, 1
        %s597 = scalar_select %p596, %s30, 1
        %s598 = smul.addr %s597, 2
        %s599 = smul.addr %s598, 8
        %s600 = scalar_lea.vmem %s14, %s599
        %p601 = scmp.lt.s32.totalorder %s30, 1
        %s602 = scalar_select %p601, %s30, 1
        %s603 = smul.addr %s602, 2
        %s604 = smul.addr %s603, 8
        %s605 = scalar_lea.vmem %s0, %s604
        %p606 = scmp.lt.s32.totalorder %s30, 1
        %s607 = scalar_select %p606, %s30, 1
        %s608 = smul.addr %s607, 2
        %s609 = smul.addr %s608, 8
        %s610 = scalar_lea.vmem %s14, %s609
        %v612 = vld [vmem:[#allocation2] sm:$0xf]
        %v613 = vld [vmem:[#allocation2 + $0x4] sm:$0x3]
        %v614 = vld [vmem:[#allocation4] sm:$0x1]
        %v615 = vld [vmem:[#allocation6] sm:$0xf]
        %v616 = vld [vmem:[#allocation6 + $0x4] sm:$0x1]
        %v617 = vld [vmem:[#allocation7] sm:$0xf]
        %v618 = vld [vmem:[#allocation7 + $0x4] sm:$0xf]
        %v619 = vld [vmem:[#allocation9] sm:$0x1f]
        %v620 = vld [vmem:[#allocation9 + $0x8] sm:$0x1f]
        %v621 = vld [vmem:[#allocation9 + $0x10] sm:$0x1f]
        %v622 = vld [vmem:[%s7] sm:$0xf]
        %v623 = vld [vmem:[%s7 + $0x4] sm:$0xf]
        %v624 = vld [vmem:[%s7 + $0x8] sm:$0xf]
        %v625 = vld [vmem:[%s7 + $0xc] sm:$0xf]
        %v626 = vld [vmem:[%s7 + $0x10] sm:$0xf]
        %v627 = vld [vmem:[%s7 + $0x14] sm:$0xf]
        %v628 = vld [vmem:[%s7 + $0x18] sm:$0xf]
        %v629 = vld [vmem:[%s7 + $0x1c] sm:$0xf]
        %v630 = vld [vmem:[%s7 + $0x20] sm:$0xf]
        %v631 = vld [vmem:[%s7 + $0x24] sm:$0xf]
        %v632 = vld [vmem:[%s7 + $0x28] sm:$0xf]
        %v633 = vld [vmem:[%s7 + $0x2c] sm:$0xf]
        %v634 = vld [vmem:[%s7 + $0x30] sm:$0xf]
        %v635 = vld [vmem:[%s7 + $0x34] sm:$0xf]
        %v636 = vld [vmem:[%s7 + $0x38] sm:$0xf]
        %v637 = vld [vmem:[%s7 + $0x3c] sm:$0xf]
        %v638 = vld [vmem:[%s7 + $0x40] sm:$0xf]
        %v639 = vld [vmem:[%s7 + $0x44] sm:$0xf]
        %v640 = vld [vmem:[%s7 + $0x48] sm:$0xf]
        %v641 = vld [vmem:[%s7 + $0x4c] sm:$0xf]
        %v642 = vld [vmem:[%s7 + $0x50] sm:$0xf]
        %v643 = vld [vmem:[%s7 + $0x54] sm:$0xf]
        %v644 = vld [vmem:[%s7 + $0x58] sm:$0xf]
        %v645 = vld [vmem:[%s7 + $0x5c] sm:$0xf]
        %v646 = vld [vmem:[%s7 + $0x60] sm:$0xf]
        %v647 = vld [vmem:[%s7 + $0x64] sm:$0xf]
        %v648 = vld [vmem:[%s7 + $0x68] sm:$0xf]
        %v649 = vld [vmem:[%s7 + $0x6c] sm:$0xf]
        %v650 = vld [vmem:[%s7 + $0x70] sm:$0xf]
        %v651 = vld [vmem:[%s7 + $0x74] sm:$0xf]
        %v652 = vld [vmem:[%s7 + $0x78] sm:$0xf]
        %v653 = vld [vmem:[%s7 + $0x7c] sm:$0xf]
        %v654 = vld [vmem:[%s7 + $0x80] sm:$0xf]
        %v655 = vld [vmem:[%s7 + $0x84] sm:$0xf]
        %v656 = vld [vmem:[%s7 + $0x88] sm:$0xf]
        %v657 = vld [vmem:[%s7 + $0x8c] sm:$0xf]
        %v658 = vld [vmem:[%s7 + $0x90] sm:$0xf]
        %v659 = vld [vmem:[%s7 + $0x94] sm:$0xf]
        %v660 = vld [vmem:[%s7 + $0x98] sm:$0xf]
        %v661 = vld [vmem:[%s7 + $0x9c] sm:$0xf]
        %v662 = vld [vmem:[#allocation13] sm:$0xf]
        %v663 = vld [vmem:[#allocation13 + $0x4] sm:$0xf]
        %v664 = vld [vmem:[#allocation13 + $0x8] sm:$0xf]
        %v665 = vld [vmem:[#allocation13 + $0xc] sm:$0xf]
        %v666 = vld [vmem:[#allocation15] sm:$0x1]
        %v667 = vld [vmem:[%s605] sm:$0xff]
        %v668 = vld [vmem:[%s605 + $0x8] sm:$0xff]
        %v669 = vpack.c.bf16 %v668, %v667
        %v671 = vperm.slane %v614, 0
        %v675 = vunpack.c.l.b16 %v612
        %v676 = vunpack.c.l.b16 %v613
        %v677 = vpack.c.b16 %v676, %v675
        %vm678 = vcmask 97280
        %v680 = vsel %vm678, %v669, 0
        %vm682 = vcmask 1045504
        %v684 = vsel %vm682, %v677, 0
        %686 = vmatpush.bf16.msra.mxu0 0
        %687 = vmatpush.bf16.msra.mxu0 0
        %688 = vmatpush.bf16.msra.mxu0 0
        %689 = vmatpush.bf16.msra.mxu0 0
        %690 = vmatpush.bf16.msra.mxu0 0
        %691 = vmatpush.bf16.msra.mxu0 0
        %692 = vmatpush.bf16.msra.mxu0 0
        %693 = vmatpush.bf16.msra.mxu0 %v684
        %694 = vmatmul.bf16.gmra.mxu0 %v680
        %v695 = vpop.f32.mrf.mxu0
        %v696 = vadd.f32 %v671, %v695
        %v697 = vpop.f32.mrf.mxu0
        %v698 = vadd.f32 %v671, %v697
        %699 = vdwg.mxu0
        %v700 = vpack.c.bf16 %v698, %v696
        %v703 = vunpack.c.l.b16 %v615
        %v704 = vunpack.c.l.b16 %v616
        %v705 = vpack.c.b16 %v704, %v703
        %vm706 = vcmask 130048
        %v708 = vsel %vm706, %v705, 0
        %710 = vmatpush.bf16.msra.mxu0 0
        %711 = vmatpush.bf16.msra.mxu0 0
        %712 = vmatpush.bf16.msra.mxu0 0
        %713 = vmatpush.bf16.msra.mxu0 0
        %714 = vmatpush.bf16.msra.mxu0 0
        %715 = vmatpush.bf16.msra.mxu0 0
        %716 = vmatpush.bf16.msra.mxu0 0
        %717 = vmatpush.bf16.msra.mxu0 %v700
        %718 = vmatmul.bf16.gmra.mxu0 %v708
        %v719 = vpop.f32.mrf.mxu0
        %v720 = vadd.f32 0.0, %v719
        %v721 = vpop.f32.mrf.mxu0
        %v722 = vadd.f32 0.0, %v721
        %723 = vdwg.mxu0
        %vm726 = vcmask 1042432
        %v727 = vrot.slane %v720, 5
        %v728 = vrot.slane %v722, 5
        %v729 = vsel %vm726, %v727, %v728
        %730 = vrot.lane.b32.xlu0 %v729, 32
        %v731 = vpop.permute.xlu0 %730
        %vm733 = vcmask 261120
        %v734 = vsel %vm733, %v720, %v731
        %v735 = vpack.c.bf16 %v734, %v734
        %v736 = vld [vmem:[%s5] sm:$0xff]
        %v737 = vld [vmem:[%s5 + $0x8] sm:$0xf]
        %v738 = vld [vmem:[%s5 + $0xc] sm:$0xff]
        %v739 = vld [vmem:[%s5 + $0x14] sm:$0xf]
        %v740 = vld [vmem:[%s5 + $0x18] sm:$0xff]
        %v741 = vld [vmem:[%s5 + $0x20] sm:$0xf]
        %v742 = vld [vmem:[%s5 + $0x24] sm:$0xff]
        %v743 = vld [vmem:[%s5 + $0x2c] sm:$0xf]
        %v744 = vld [vmem:[%s5 + $0x30] sm:$0xff]
        %v745 = vld [vmem:[%s5 + $0x38] sm:$0xf]
        %v746 = vld [vmem:[%s5 + $0x3c] sm:$0xff]
        %v747 = vld [vmem:[%s5 + $0x44] sm:$0xf]
        %v748 = vld [vmem:[%s5 + $0x48] sm:$0xff]
        %v749 = vld [vmem:[%s5 + $0x50] sm:$0xf]
        %v750 = vld [vmem:[%s5 + $0x54] sm:$0xff]
        %v751 = vld [vmem:[%s5 + $0x5c] sm:$0xf]
        %v768 = vunpack.c.l.b16 %v736
        %v769 = vunpack.c.h.b16 %v736
        %v770 = vunpack.c.l.b16 %v737
        %v771 = vunpack.c.l.b16 %v738
        %v772 = vunpack.c.h.b16 %v738
        %v773 = vunpack.c.l.b16 %v739
        %v774 = vunpack.c.l.b16 %v740
        %v775 = vunpack.c.h.b16 %v740
        %v776 = vunpack.c.l.b16 %v741
        %v777 = vunpack.c.l.b16 %v742
        %v778 = vunpack.c.h.b16 %v742
        %v779 = vunpack.c.l.b16 %v743
        %v780 = vunpack.c.l.b16 %v744
        %v781 = vunpack.c.h.b16 %v744
        %v782 = vunpack.c.l.b16 %v745
        %v783 = vunpack.c.l.b16 %v746
        %v784 = vunpack.c.h.b16 %v746
        %v785 = vunpack.c.l.b16 %v747
        %v786 = vunpack.c.l.b16 %v748
        %v787 = vunpack.c.h.b16 %v748
        %v788 = vunpack.c.l.b16 %v749
        %v789 = vunpack.c.l.b16 %v750
        %v790 = vunpack.c.h.b16 %v750
        %v791 = vunpack.c.l.b16 %v751
        %v792 = vpack.c.b16 %v771, %v768
        %v793 = vpack.c.b16 %v772, %v769
        %v794 = vpack.c.b16 %v773, %v770
        %v795 = vpack.c.b16 %v777, %v774
        %v796 = vpack.c.b16 %v778, %v775
        %v797 = vpack.c.b16 %v779, %v776
        %v798 = vpack.c.b16 %v783, %v780
        %v799 = vpack.c.b16 %v784, %v781
        %v800 = vpack.c.b16 %v785, %v782
        %v801 = vpack.c.b16 %v789, %v786
        %v802 = vpack.c.b16 %v790, %v787
        %v803 = vpack.c.b16 %v791, %v788
        %vm816 = vcmask 523264
        %v818 = vsel %vm816, %v735, 0
        %820 = vmatpush.bf16.msra.mxu0 0
        %821 = vmatpush.bf16.msra.mxu0 0
        %822 = vmatpush.bf16.msra.mxu0 0
        %823 = vmatpush.bf16.msra.mxu0 0
        %824 = vmatpush.bf16.msra.mxu0 %v801
        %825 = vmatpush.bf16.msra.mxu0 %v798
        %826 = vmatpush.bf16.msra.mxu0 %v795
        %827 = vmatpush.bf16.msra.mxu0 %v792
        %828 = vmatmul.bf16.gmra.mxu0 %v818
        %v829 = vpop.f32.mrf.mxu0
        %v830 = vadd.f32 0.0, %v829
        %v831 = vpop.f32.mrf.mxu0
        %832 = vdwg.mxu0
        %833 = vmatpush.bf16.msra.mxu0 0
        %834 = vmatpush.bf16.msra.mxu0 0
        %835 = vmatpush.bf16.msra.mxu0 0
        %836 = vmatpush.bf16.msra.mxu0 0
        %837 = vmatpush.bf16.msra.mxu0 %v802
        %838 = vmatpush.bf16.msra.mxu0 %v799
        %839 = vmatpush.bf16.msra.mxu0 %v796
        %840 = vmatpush.bf16.msra.mxu0 %v793
        %841 = vmatmul.bf16.gmra.mxu0 %v818
        %v842 = vpop.f32.mrf.mxu0
        %v843 = vadd.f32 0.0, %v842
        %v844 = vpop.f32.mrf.mxu0
        %845 = vdwg.mxu0
        %846 = vmatpush.bf16.msra.mxu0 0
        %847 = vmatpush.bf16.msra.mxu0 0
        %848 = vmatpush.bf16.msra.mxu0 0
        %849 = vmatpush.bf16.msra.mxu0 0
        %850 = vmatpush.bf16.msra.mxu0 %v803
        %851 = vmatpush.bf16.msra.mxu0 %v800
        %852 = vmatpush.bf16.msra.mxu0 %v797
        %853 = vmatpush.bf16.msra.mxu0 %v794
        %854 = vmatmul.bf16.gmra.mxu0 %v818
        %v855 = vpop.f32.mrf.mxu0
        %v856 = vadd.f32 0.0, %v855
        %v857 = vpop.f32.mrf.mxu0
        %858 = vdwg.mxu0
        %v859 = vmul.f32 %v830, %v619
        %v860 = vmul.f32 %v843, %v620
        %v861 = vmul.f32 %v856, %v621
        %v862 = vpack.c.bf16 %v859, %v859
        %v863 = vpack.c.bf16 %v860, %v860
        %v864 = vpack.c.bf16 %v861, %v861
        %v905 = vunpack.c.l.b16 %v622
        %v906 = vunpack.c.l.b16 %v623
        %v907 = vunpack.c.l.b16 %v624
        %v908 = vunpack.c.l.b16 %v625
        %v909 = vunpack.c.l.b16 %v626
        %v910 = vunpack.c.l.b16 %v627
        %v911 = vunpack.c.l.b16 %v628
        %v912 = vunpack.c.l.b16 %v629
        %v913 = vunpack.c.l.b16 %v630
        %v914 = vunpack.c.l.b16 %v631
        %v915 = vunpack.c.l.b16 %v632
        %v916 = vunpack.c.l.b16 %v633
        %v917 = vunpack.c.l.b16 %v634
        %v918 = vunpack.c.l.b16 %v635
        %v919 = vunpack.c.l.b16 %v636
        %v920 = vunpack.c.l.b16 %v637
        %v921 = vunpack.c.l.b16 %v638
        %v922 = vunpack.c.l.b16 %v639
        %v923 = vunpack.c.l.b16 %v640
        %v924 = vunpack.c.l.b16 %v641
        %v925 = vunpack.c.l.b16 %v642
        %v926 = vunpack.c.l.b16 %v643
        %v927 = vunpack.c.l.b16 %v644
        %v928 = vunpack.c.l.b16 %v645
        %v929 = vunpack.c.l.b16 %v646
        %v930 = vunpack.c.l.b16 %v647
        %v931 = vunpack.c.l.b16 %v648
        %v932 = vunpack.c.l.b16 %v649
        %v933 = vunpack.c.l.b16 %v650
        %v934 = vunpack.c.l.b16 %v651
        %v935 = vunpack.c.l.b16 %v652
        %v936 = vunpack.c.l.b16 %v653
        %v937 = vunpack.c.l.b16 %v654
        %v938 = vunpack.c.l.b16 %v655
        %v939 = vunpack.c.l.b16 %v656
        %v940 = vunpack.c.l.b16 %v657
        %v941 = vunpack.c.l.b16 %v658
        %v942 = vunpack.c.l.b16 %v659
        %v943 = vunpack.c.l.b16 %v660
        %v944 = vunpack.c.l.b16 %v661
        %v945 = vpack.c.b16 %v906, %v905
        %v946 = vpack.c.b16 %v908, %v907
        %v947 = vpack.c.b16 %v910, %v909
        %v948 = vpack.c.b16 %v912, %v911
        %v949 = vpack.c.b16 %v914, %v913
        %v950 = vpack.c.b16 %v916, %v915
        %v951 = vpack.c.b16 %v918, %v917
        %v952 = vpack.c.b16 %v920, %v919
        %v953 = vpack.c.b16 %v922, %v921
        %v954 = vpack.c.b16 %v924, %v923
        %v955 = vpack.c.b16 %v926, %v925
        %v956 = vpack.c.b16 %v928, %v927
        %v957 = vpack.c.b16 %v930, %v929
        %v958 = vpack.c.b16 %v932, %v931
        %v959 = vpack.c.b16 %v934, %v933
        %v960 = vpack.c.b16 %v936, %v935
        %v961 = vpack.c.b16 %v938, %v937
        %v962 = vpack.c.b16 %v940, %v939
        %v963 = vpack.c.b16 %v942, %v941
        %v964 = vpack.c.b16 %v944, %v943
        %v986 = vsel %vm816, %v864, 0
        %988 = vmatpush.bf16.msra.mxu0 %v952
        %989 = vmatpush.bf16.msra.mxu0 %v951
        %990 = vmatpush.bf16.msra.mxu0 %v950
        %991 = vmatpush.bf16.msra.mxu0 %v949
        %992 = vmatpush.bf16.msra.mxu0 %v948
        %993 = vmatpush.bf16.msra.mxu0 %v947
        %994 = vmatpush.bf16.msra.mxu0 %v946
        %995 = vmatpush.bf16.msra.mxu0 %v945
        %996 = vmatmul.bf16.gmra.mxu0 %v862
        %v997 = vpop.f32.mrf.mxu0
        %v998 = vadd.f32 0.0, %v997
        %v999 = vpop.f32.mrf.mxu0
        %1000 = vdwg.mxu0
        %1001 = vmatpush.bf16.msra.mxu0 %v960
        %1002 = vmatpush.bf16.msra.mxu0 %v959
        %1003 = vmatpush.bf16.msra.mxu0 %v958
        %1004 = vmatpush.bf16.msra.mxu0 %v957
        %1005 = vmatpush.bf16.msra.mxu0 %v956
        %1006 = vmatpush.bf16.msra.mxu0 %v955
        %1007 = vmatpush.bf16.msra.mxu0 %v954
        %1008 = vmatpush.bf16.msra.mxu0 %v953
        %1009 = vmatmul.bf16.gmra.mxu0 %v863
        %v1010 = vpop.f32.mrf.mxu0
        %v1011 = vadd.f32 %v998, %v1010
        %v1012 = vpop.f32.mrf.mxu0
        %1013 = vdwg.mxu0
        %1014 = vmatpush.bf16.msra.mxu0 0
        %1015 = vmatpush.bf16.msra.mxu0 0
        %1016 = vmatpush.bf16.msra.mxu0 0
        %1017 = vmatpush.bf16.msra.mxu0 0
        %1018 = vmatpush.bf16.msra.mxu0 %v964
        %1019 = vmatpush.bf16.msra.mxu0 %v963
        %1020 = vmatpush.bf16.msra.mxu0 %v962
        %1021 = vmatpush.bf16.msra.mxu0 %v961
        %1022 = vmatmul.bf16.gmra.mxu0 %v986
        %v1023 = vpop.f32.mrf.mxu0
        %v1024 = vadd.f32 %v1011, %v1023
        %v1025 = vpop.f32.mrf.mxu0
        %1026 = vdwg.mxu0
        %v1028 = vrot.slane %v1024, 3
        %1029 = vrot.lane.b32.xlu0 %v1028, 96
        %v1030 = vpop.permute.xlu0 %1029
        %vm1032 = vcmask 1044480
        %v1033 = vsel %vm1032, %v1024, %v1030
        %v1034 = vpack.c.bf16 %v1030, %v1033
        %v1037 = vunpack.c.l.b16 %v617
        %v1038 = vunpack.c.l.b16 %v618
        %v1039 = vpack.c.b16 %v1038, %v1037
        %vm1040 = vcmask 80896
        %v1042 = vsel %vm1040, %v1039, 0
        %v1045 = vsel %vm1032, %v1034, 0
        %1047 = vmatpush.bf16.msra.mxu0 0
        %1048 = vmatpush.bf16.msra.mxu0 0
        %1049 = vmatpush.bf16.msra.mxu0 0
        %1050 = vmatpush.bf16.msra.mxu0 0
        %1051 = vmatpush.bf16.msra.mxu0 0
        %1052 = vmatpush.bf16.msra.mxu0 0
        %1053 = vmatpush.bf16.msra.mxu0 0
        %1054 = vmatpush.bf16.msra.mxu0 %v1045
        %1055 = vmatmul.bf16.gmra.mxu0 %v1042
        %v1056 = vpop.f32.mrf.mxu0
        %v1057 = vadd.f32 0.0, %v1056
        %v1058 = vpop.f32.mrf.mxu0
        %v1059 = vadd.f32 0.0, %v1058
        %1060 = vdwg.mxu0
        %v1061 = vpack.c.bf16 %v1059, %v1057
        %v1062 = vld [vmem:[%s8] sm:$0xf]
        %v1063 = vld [vmem:[%s8 + $0x4] sm:$0xf]
        %v1064 = vld [vmem:[%s8 + $0x8] sm:$0xf]
        %v1065 = vld [vmem:[%s8 + $0xc] sm:$0xf]
        %v1066 = vld [vmem:[#allocation10] sm:$0x1]
        %v1068 = vperm.slane %v1066, 0
        %v1074 = vunpack.c.l.b16 %v1062
        %v1075 = vunpack.c.l.b16 %v1063
        %v1076 = vunpack.c.l.b16 %v1064
        %v1077 = vunpack.c.l.b16 %v1065
        %v1078 = vpack.c.b16 %v1075, %v1074
        %v1079 = vpack.c.b16 %v1077, %v1076
        %v1083 = vsel %vm733, %v1061, 0
        %1085 = vmatpush.bf16.msra.mxu0 0
        %1086 = vmatpush.bf16.msra.mxu0 0
        %1087 = vmatpush.bf16.msra.mxu0 0
        %1088 = vmatpush.bf16.msra.mxu0 0
        %1089 = vmatpush.bf16.msra.mxu0 0
        %1090 = vmatpush.bf16.msra.mxu0 0
        %1091 = vmatpush.bf16.msra.mxu0 %v1079
        %1092 = vmatpush.bf16.msra.mxu0 %v1078
        %1093 = vmatmul.bf16.gmra.mxu0 %v1083
        %v1094 = vpop.f32.mrf.mxu0
        %v1095 = vadd.f32 %v1068, %v1094
        %v1096 = vpop.f32.mrf.mxu0
        %v1097 = vadd.f32 %v1068, %v1096
        %1098 = vdwg.mxu0
        %v1099 = vmax.f32 %v1095, 0.0
        %v1100 = vmax.f32 %v1097, 0.0
        %v1101 = vpack.c.bf16 %v1100, %v1099
        %v1102 = vld [vmem:[%s10] sm:$0xf]
        %v1103 = vld [vmem:[%s10 + $0x4] sm:$0xf]
        %v1104 = vld [vmem:[%s10 + $0x8] sm:$0xf]
        %v1105 = vld [vmem:[%s10 + $0xc] sm:$0xf]
        %v1106 = vld [vmem:[%s10 + $0x10] sm:$0xf]
        %v1107 = vld [vmem:[%s10 + $0x14] sm:$0xf]
        %v1108 = vld [vmem:[%s10 + $0x18] sm:$0xf]
        %v1109 = vld [vmem:[%s10 + $0x1c] sm:$0xf]
        %v1110 = vld [vmem:[#allocation12] sm:$0x1]
        %v1112 = vperm.slane %v1110, 0
        %v1122 = vunpack.c.l.b16 %v1102
        %v1123 = vunpack.c.l.b16 %v1103
        %v1124 = vunpack.c.l.b16 %v1104
        %v1125 = vunpack.c.l.b16 %v1105
        %v1126 = vunpack.c.l.b16 %v1106
        %v1127 = vunpack.c.l.b16 %v1107
        %v1128 = vunpack.c.l.b16 %v1108
        %v1129 = vunpack.c.l.b16 %v1109
        %v1130 = vpack.c.b16 %v1123, %v1122
        %v1131 = vpack.c.b16 %v1125, %v1124
        %v1132 = vpack.c.b16 %v1127, %v1126
        %v1133 = vpack.c.b16 %v1129, %v1128
        %v1139 = vsel %vm816, %v1101, 0
        %1141 = vmatpush.bf16.msra.mxu0 0
        %1142 = vmatpush.bf16.msra.mxu0 0
        %1143 = vmatpush.bf16.msra.mxu0 0
        %1144 = vmatpush.bf16.msra.mxu0 0
        %1145 = vmatpush.bf16.msra.mxu0 %v1133
        %1146 = vmatpush.bf16.msra.mxu0 %v1132
        %1147 = vmatpush.bf16.msra.mxu0 %v1131
        %1148 = vmatpush.bf16.msra.mxu0 %v1130
        %1149 = vmatmul.bf16.gmra.mxu0 %v1139
        %v1150 = vpop.f32.mrf.mxu0
        %v1151 = vadd.f32 %v1112, %v1150
        %v1152 = vpop.f32.mrf.mxu0
        %v1153 = vadd.f32 %v1112, %v1152
        %1154 = vdwg.mxu0
        %v1155 = vadd.f32 %v696, %v1151
        %v1156 = vadd.f32 %v698, %v1153
        %v1157 = vpack.c.bf16 %v1156, %v1155
        %1158 = vmatpush.bf16.msra.mxu0 0
        %1159 = vmatpush.bf16.msra.mxu0 0
        %1160 = vmatpush.bf16.msra.mxu0 0
        %1161 = vmatpush.bf16.msra.mxu0 0
        %1162 = vmatpush.bf16.msra.mxu0 0
        %1163 = vmatpush.bf16.msra.mxu0 0
        %1164 = vmatpush.bf16.msra.mxu0 0
        %1165 = vmatpush.bf16.msra.mxu0 %v1157
        %1166 = vmatmul.bf16.gmra.mxu0 %v708
        %v1167 = vpop.f32.mrf.mxu0
        %v1168 = vadd.f32 0.0, %v1167
        %v1169 = vpop.f32.mrf.mxu0
        %v1170 = vadd.f32 0.0, %v1169
        %1171 = vdwg.mxu0
        %v1174 = vrot.slane %v1168, 5
        %v1175 = vrot.slane %v1170, 5
        %v1176 = vsel %vm726, %v1174, %v1175
        %1177 = vrot.lane.b32.xlu0 %v1176, 32
        %v1178 = vpop.permute.xlu0 %1177
        %v1180 = vsel %vm733, %v1168, %v1178
        %v1181 = vpack.c.bf16 %v1180, %v1180
        %s1182 = scalar_lea.vmem %s5, 96
        %v1183 = vld [vmem:[%s1182] sm:$0xff]
        %v1184 = vld [vmem:[%s1182 + $0x8] sm:$0xf]
        %v1185 = vld [vmem:[%s1182 + $0xc] sm:$0xff]
        %v1186 = vld [vmem:[%s1182 + $0x14] sm:$0xf]
        %v1187 = vld [vmem:[%s1182 + $0x18] sm:$0xff]
        %v1188 = vld [vmem:[%s1182 + $0x20] sm:$0xf]
        %v1189 = vld [vmem:[%s1182 + $0x24] sm:$0xff]
        %v1190 = vld [vmem:[%s1182 + $0x2c] sm:$0xf]
        %v1191 = vld [vmem:[%s1182 + $0x30] sm:$0xff]
        %v1192 = vld [vmem:[%s1182 + $0x38] sm:$0xf]
        %v1193 = vld [vmem:[%s1182 + $0x3c] sm:$0xff]
        %v1194 = vld [vmem:[%s1182 + $0x44] sm:$0xf]
        %v1195 = vld [vmem:[%s1182 + $0x48] sm:$0xff]
        %v1196 = vld [vmem:[%s1182 + $0x50] sm:$0xf]
        %v1197 = vld [vmem:[%s1182 + $0x54] sm:$0xff]
        %v1198 = vld [vmem:[%s1182 + $0x5c] sm:$0xf]
        %v1215 = vunpack.c.l.b16 %v1183
        %v1216 = vunpack.c.h.b16 %v1183
        %v1217 = vunpack.c.l.b16 %v1184
        %v1218 = vunpack.c.l.b16 %v1185
        %v1219 = vunpack.c.h.b16 %v1185
        %v1220 = vunpack.c.l.b16 %v1186
        %v1221 = vunpack.c.l.b16 %v1187
        %v1222 = vunpack.c.h.b16 %v1187
        %v1223 = vunpack.c.l.b16 %v1188
        %v1224 = vunpack.c.l.b16 %v1189
        %v1225 = vunpack.c.h.b16 %v1189
        %v1226 = vunpack.c.l.b16 %v1190
        %v1227 = vunpack.c.l.b16 %v1191
        %v1228 = vunpack.c.h.b16 %v1191
        %v1229 = vunpack.c.l.b16 %v1192
        %v1230 = vunpack.c.l.b16 %v1193
        %v1231 = vunpack.c.h.b16 %v1193
        %v1232 = vunpack.c.l.b16 %v1194
        %v1233 = vunpack.c.l.b16 %v1195
        %v1234 = vunpack.c.h.b16 %v1195
        %v1235 = vunpack.c.l.b16 %v1196
        %v1236 = vunpack.c.l.b16 %v1197
        %v1237 = vunpack.c.h.b16 %v1197
        %v1238 = vunpack.c.l.b16 %v1198
        %v1239 = vpack.c.b16 %v1218, %v1215
        %v1240 = vpack.c.b16 %v1219, %v1216
        %v1241 = vpack.c.b16 %v1220, %v1217
        %v1242 = vpack.c.b16 %v1224, %v1221
        %v1243 = vpack.c.b16 %v1225, %v1222
        %v1244 = vpack.c.b16 %v1226, %v1223
        %v1245 = vpack.c.b16 %v1230, %v1227
        %v1246 = vpack.c.b16 %v1231, %v1228
        %v1247 = vpack.c.b16 %v1232, %v1229
        %v1248 = vpack.c.b16 %v1236, %v1233
        %v1249 = vpack.c.b16 %v1237, %v1234
        %v1250 = vpack.c.b16 %v1238, %v1235
        %v1264 = vsel %vm816, %v1181, 0
        %1266 = vmatpush.bf16.msra.mxu0 0
        %1267 = vmatpush.bf16.msra.mxu0 0
        %1268 = vmatpush.bf16.msra.mxu0 0
        %1269 = vmatpush.bf16.msra.mxu0 0
        %1270 = vmatpush.bf16.msra.mxu0 %v1248
        %1271 = vmatpush.bf16.msra.mxu0 %v1245
        %1272 = vmatpush.bf16.msra.mxu0 %v1242
        %1273 = vmatpush.bf16.msra.mxu0 %v1239
        %1274 = vmatmul.bf16.gmra.mxu0 %v1264
        %v1275 = vpop.f32.mrf.mxu0
        %v1276 = vadd.f32 0.0, %v1275
        %v1277 = vpop.f32.mrf.mxu0
        %1278 = vdwg.mxu0
        %1279 = vmatpush.bf16.msra.mxu0 0
        %1280 = vmatpush.bf16.msra.mxu0 0
        %1281 = vmatpush.bf16.msra.mxu0 0
        %1282 = vmatpush.bf16.msra.mxu0 0
        %1283 = vmatpush.bf16.msra.mxu0 %v1249
        %1284 = vmatpush.bf16.msra.mxu0 %v1246
        %1285 = vmatpush.bf16.msra.mxu0 %v1243
        %1286 = vmatpush.bf16.msra.mxu0 %v1240
        %1287 = vmatmul.bf16.gmra.mxu0 %v1264
        %v1288 = vpop.f32.mrf.mxu0
        %v1289 = vadd.f32 0.0, %v1288
        %v1290 = vpop.f32.mrf.mxu0
        %1291 = vdwg.mxu0
        %1292 = vmatpush.bf16.msra.mxu0 0
        %1293 = vmatpush.bf16.msra.mxu0 0
        %1294 = vmatpush.bf16.msra.mxu0 0
        %1295 = vmatpush.bf16.msra.mxu0 0
        %1296 = vmatpush.bf16.msra.mxu0 %v1250
        %1297 = vmatpush.bf16.msra.mxu0 %v1247
        %1298 = vmatpush.bf16.msra.mxu0 %v1244
        %1299 = vmatpush.bf16.msra.mxu0 %v1241
        %1300 = vmatmul.bf16.gmra.mxu0 %v1264
        %v1301 = vpop.f32.mrf.mxu0
        %v1302 = vadd.f32 0.0, %v1301
        %v1303 = vpop.f32.mrf.mxu0
        %1304 = vdwg.mxu0
        %v1305 = vmul.f32 %v1276, %v619
        %v1306 = vmul.f32 %v1289, %v620
        %v1307 = vmul.f32 %v1302, %v621
        %v1308 = vpack.c.bf16 %v1305, %v1305
        %v1309 = vpack.c.bf16 %v1306, %v1306
        %v1310 = vpack.c.bf16 %v1307, %v1307
        %v1312 = vsel %vm816, %v1310, 0
        %1314 = vmatpush.bf16.msra.mxu0 %v952
        %1315 = vmatpush.bf16.msra.mxu0 %v951
        %1316 = vmatpush.bf16.msra.mxu0 %v950
        %1317 = vmatpush.bf16.msra.mxu0 %v949
        %1318 = vmatpush.bf16.msra.mxu0 %v948
        %1319 = vmatpush.bf16.msra.mxu0 %v947
        %1320 = vmatpush.bf16.msra.mxu0 %v946
        %1321 = vmatpush.bf16.msra.mxu0 %v945
        %1322 = vmatmul.bf16.gmra.mxu0 %v1308
        %v1323 = vpop.f32.mrf.mxu0
        %v1324 = vadd.f32 0.0, %v1323
        %v1325 = vpop.f32.mrf.mxu0
        %1326 = vdwg.mxu0
        %1327 = vmatpush.bf16.msra.mxu0 %v960
        %1328 = vmatpush.bf16.msra.mxu0 %v959
        %1329 = vmatpush.bf16.msra.mxu0 %v958
        %1330 = vmatpush.bf16.msra.mxu0 %v957
        %1331 = vmatpush.bf16.msra.mxu0 %v956
        %1332 = vmatpush.bf16.msra.mxu0 %v955
        %1333 = vmatpush.bf16.msra.mxu0 %v954
        %1334 = vmatpush.bf16.msra.mxu0 %v953
        %1335 = vmatmul.bf16.gmra.mxu0 %v1309
        %v1336 = vpop.f32.mrf.mxu0
        %v1337 = vadd.f32 %v1324, %v1336
        %v1338 = vpop.f32.mrf.mxu0
        %1339 = vdwg.mxu0
        %1340 = vmatpush.bf16.msra.mxu0 0
        %1341 = vmatpush.bf16.msra.mxu0 0
        %1342 = vmatpush.bf16.msra.mxu0 0
        %1343 = vmatpush.bf16.msra.mxu0 0
        %1344 = vmatpush.bf16.msra.mxu0 %v964
        %1345 = vmatpush.bf16.msra.mxu0 %v963
        %1346 = vmatpush.bf16.msra.mxu0 %v962
        %1347 = vmatpush.bf16.msra.mxu0 %v961
        %1348 = vmatmul.bf16.gmra.mxu0 %v1312
        %v1349 = vpop.f32.mrf.mxu0
        %v1350 = vadd.f32 %v1337, %v1349
        %v1351 = vpop.f32.mrf.mxu0
        %1352 = vdwg.mxu0
        %v1354 = vrot.slane %v1350, 3
        %1355 = vrot.lane.b32.xlu0 %v1354, 96
        %v1356 = vpop.permute.xlu0 %1355
        %v1358 = vsel %vm1032, %v1350, %v1356
        %v1359 = vpack.c.bf16 %v1356, %v1358
        %v1361 = vsel %vm1032, %v1359, 0
        %1363 = vmatpush.bf16.msra.mxu0 0
        %1364 = vmatpush.bf16.msra.mxu0 0
        %1365 = vmatpush.bf16.msra.mxu0 0
        %1366 = vmatpush.bf16.msra.mxu0 0
        %1367 = vmatpush.bf16.msra.mxu0 0
        %1368 = vmatpush.bf16.msra.mxu0 0
        %1369 = vmatpush.bf16.msra.mxu0 0
        %1370 = vmatpush.bf16.msra.mxu0 %v1361
        %1371 = vmatmul.bf16.gmra.mxu0 %v1042
        %v1372 = vpop.f32.mrf.mxu0
        %v1373 = vadd.f32 0.0, %v1372
        %v1374 = vpop.f32.mrf.mxu0
        %v1375 = vadd.f32 0.0, %v1374
        %1376 = vdwg.mxu0
        %v1377 = vpack.c.bf16 %v1375, %v1373
        %s1378 = scalar_lea.vmem %s8, 16
        %v1379 = vld [vmem:[%s1378] sm:$0xf]
        %v1380 = vld [vmem:[%s1378 + $0x4] sm:$0xf]
        %v1381 = vld [vmem:[%s1378 + $0x8] sm:$0xf]
        %v1382 = vld [vmem:[%s1378 + $0xc] sm:$0xf]
        %s1383 = scalar_lea.vmem [#allocation10], 1
        %v1384 = vld [vmem:[%s1383] sm:$0x1]
        %v1386 = vperm.slane %v1384, 0
        %v1392 = vunpack.c.l.b16 %v1379
        %v1393 = vunpack.c.l.b16 %v1380
        %v1394 = vunpack.c.l.b16 %v1381
        %v1395 = vunpack.c.l.b16 %v1382
        %v1396 = vpack.c.b16 %v1393, %v1392
        %v1397 = vpack.c.b16 %v1395, %v1394
        %v1401 = vsel %vm733, %v1377, 0
        %1403 = vmatpush.bf16.msra.mxu0 0
        %1404 = vmatpush.bf16.msra.mxu0 0
        %1405 = vmatpush.bf16.msra.mxu0 0
        %1406 = vmatpush.bf16.msra.mxu0 0
        %1407 = vmatpush.bf16.msra.mxu0 0
        %1408 = vmatpush.bf16.msra.mxu0 0
        %1409 = vmatpush.bf16.msra.mxu0 %v1397
        %1410 = vmatpush.bf16.msra.mxu0 %v1396
        %1411 = vmatmul.bf16.gmra.mxu0 %v1401
        %v1412 = vpop.f32.mrf.mxu0
        %v1413 = vadd.f32 %v1386, %v1412
        %v1414 = vpop.f32.mrf.mxu0
        %v1415 = vadd.f32 %v1386, %v1414
        %1416 = vdwg.mxu0
        %v1417 = vmax.f32 %v1413, 0.0
        %v1418 = vmax.f32 %v1415, 0.0
        %v1419 = vpack.c.bf16 %v1418, %v1417
        %s1420 = scalar_lea.vmem %s10, 32
        %v1421 = vld [vmem:[%s1420] sm:$0xf]
        %v1422 = vld [vmem:[%s1420 + $0x4] sm:$0xf]
        %v1423 = vld [vmem:[%s1420 + $0x8] sm:$0xf]
        %v1424 = vld [vmem:[%s1420 + $0xc] sm:$0xf]
        %v1425 = vld [vmem:[%s1420 + $0x10] sm:$0xf]
        %v1426 = vld [vmem:[%s1420 + $0x14] sm:$0xf]
        %v1427 = vld [vmem:[%s1420 + $0x18] sm:$0xf]
        %v1428 = vld [vmem:[%s1420 + $0x1c] sm:$0xf]
        %s1429 = scalar_lea.vmem [#allocation12], 1
        %v1430 = vld [vmem:[%s1429] sm:$0x1]
        %v1432 = vperm.slane %v1430, 0
        %v1442 = vunpack.c.l.b16 %v1421
        %v1443 = vunpack.c.l.b16 %v1422
        %v1444 = vunpack.c.l.b16 %v1423
        %v1445 = vunpack.c.l.b16 %v1424
        %v1446 = vunpack.c.l.b16 %v1425
        %v1447 = vunpack.c.l.b16 %v1426
        %v1448 = vunpack.c.l.b16 %v1427
        %v1449 = vunpack.c.l.b16 %v1428
        %v1450 = vpack.c.b16 %v1443, %v1442
        %v1451 = vpack.c.b16 %v1445, %v1444
        %v1452 = vpack.c.b16 %v1447, %v1446
        %v1453 = vpack.c.b16 %v1449, %v1448
        %v1459 = vsel %vm816, %v1419, 0
        %1461 = vmatpush.bf16.msra.mxu0 0
        %1462 = vmatpush.bf16.msra.mxu0 0
        %1463 = vmatpush.bf16.msra.mxu0 0
        %1464 = vmatpush.bf16.msra.mxu0 0
        %1465 = vmatpush.bf16.msra.mxu0 %v1453
        %1466 = vmatpush.bf16.msra.mxu0 %v1452
        %1467 = vmatpush.bf16.msra.mxu0 %v1451
        %1468 = vmatpush.bf16.msra.mxu0 %v1450
        %1469 = vmatmul.bf16.gmra.mxu0 %v1459
        %v1470 = vpop.f32.mrf.mxu0
        %v1471 = vadd.f32 %v1432, %v1470
        %v1472 = vpop.f32.mrf.mxu0
        %v1473 = vadd.f32 %v1432, %v1472
        %1474 = vdwg.mxu0
        %v1475 = vadd.f32 %v1155, %v1471
        %v1476 = vadd.f32 %v1156, %v1473
        %v1477 = vpack.c.bf16 %v1476, %v1475
        %1478 = vmatpush.bf16.msra.mxu0 0
        %1479 = vmatpush.bf16.msra.mxu0 0
        %1480 = vmatpush.bf16.msra.mxu0 0
        %1481 = vmatpush.bf16.msra.mxu0 0
        %1482 = vmatpush.bf16.msra.mxu0 0
        %1483 = vmatpush.bf16.msra.mxu0 0
        %1484 = vmatpush.bf16.msra.mxu0 0
        %1485 = vmatpush.bf16.msra.mxu0 %v1477
        %1486 = vmatmul.bf16.gmra.mxu0 %v708
        %v1487 = vpop.f32.mrf.mxu0
        %v1488 = vadd.f32 0.0, %v1487
        %v1489 = vpop.f32.mrf.mxu0
        %v1490 = vadd.f32 0.0, %v1489
        %1491 = vdwg.mxu0
        %v1494 = vrot.slane %v1488, 5
        %v1495 = vrot.slane %v1490, 5
        %v1496 = vsel %vm726, %v1494, %v1495
        %1497 = vrot.lane.b32.xlu0 %v1496, 32
        %v1498 = vpop.permute.xlu0 %1497
        %v1500 = vsel %vm733, %v1488, %v1498
        %v1501 = vpack.c.bf16 %v1500, %v1500
        %s1502 = scalar_lea.vmem %s5, 192
        %v1503 = vld [vmem:[%s1502] sm:$0xff]
        %v1504 = vld [vmem:[%s1502 + $0x8] sm:$0xf]
        %v1505 = vld [vmem:[%s1502 + $0xc] sm:$0xff]
        %v1506 = vld [vmem:[%s1502 + $0x14] sm:$0xf]
        %v1507 = vld [vmem:[%s1502 + $0x18] sm:$0xff]
        %v1508 = vld [vmem:[%s1502 + $0x20] sm:$0xf]
        %v1509 = vld [vmem:[%s1502 + $0x24] sm:$0xff]
        %v1510 = vld [vmem:[%s1502 + $0x2c] sm:$0xf]
        %v1511 = vld [vmem:[%s1502 + $0x30] sm:$0xff]
        %v1512 = vld [vmem:[%s1502 + $0x38] sm:$0xf]
        %v1513 = vld [vmem:[%s1502 + $0x3c] sm:$0xff]
        %v1514 = vld [vmem:[%s1502 + $0x44] sm:$0xf]
        %v1515 = vld [vmem:[%s1502 + $0x48] sm:$0xff]
        %v1516 = vld [vmem:[%s1502 + $0x50] sm:$0xf]
        %v1517 = vld [vmem:[%s1502 + $0x54] sm:$0xff]
        %v1518 = vld [vmem:[%s1502 + $0x5c] sm:$0xf]
        %v1535 = vunpack.c.l.b16 %v1503
        %v1536 = vunpack.c.h.b16 %v1503
        %v1537 = vunpack.c.l.b16 %v1504
        %v1538 = vunpack.c.l.b16 %v1505
        %v1539 = vunpack.c.h.b16 %v1505
        %v1540 = vunpack.c.l.b16 %v1506
        %v1541 = vunpack.c.l.b16 %v1507
        %v1542 = vunpack.c.h.b16 %v1507
        %v1543 = vunpack.c.l.b16 %v1508
        %v1544 = vunpack.c.l.b16 %v1509
        %v1545 = vunpack.c.h.b16 %v1509
        %v1546 = vunpack.c.l.b16 %v1510
        %v1547 = vunpack.c.l.b16 %v1511
        %v1548 = vunpack.c.h.b16 %v1511
        %v1549 = vunpack.c.l.b16 %v1512
        %v1550 = vunpack.c.l.b16 %v1513
        %v1551 = vunpack.c.h.b16 %v1513
        %v1552 = vunpack.c.l.b16 %v1514
        %v1553 = vunpack.c.l.b16 %v1515
        %v1554 = vunpack.c.h.b16 %v1515
        %v1555 = vunpack.c.l.b16 %v1516
        %v1556 = vunpack.c.l.b16 %v1517
        %v1557 = vunpack.c.h.b16 %v1517
        %v1558 = vunpack.c.l.b16 %v1518
        %v1559 = vpack.c.b16 %v1538, %v1535
        %v1560 = vpack.c.b16 %v1539, %v1536
        %v1561 = vpack.c.b16 %v1540, %v1537
        %v1562 = vpack.c.b16 %v1544, %v1541
        %v1563 = vpack.c.b16 %v1545, %v1542
        %v1564 = vpack.c.b16 %v1546, %v1543
        %v1565 = vpack.c.b16 %v1550, %v1547
        %v1566 = vpack.c.b16 %v1551, %v1548
        %v1567 = vpack.c.b16 %v1552, %v1549
        %v1568 = vpack.c.b16 %v1556, %v1553
        %v1569 = vpack.c.b16 %v1557, %v1554
        %v1570 = vpack.c.b16 %v1558, %v1555
        %v1584 = vsel %vm816, %v1501, 0
        %1586 = vmatpush.bf16.msra.mxu0 0
        %1587 = vmatpush.bf16.msra.mxu0 0
        %1588 = vmatpush.bf16.msra.mxu0 0
        %1589 = vmatpush.bf16.msra.mxu0 0
        %1590 = vmatpush.bf16.msra.mxu0 %v1568
        %1591 = vmatpush.bf16.msra.mxu0 %v1565
        %1592 = vmatpush.bf16.msra.mxu0 %v1562
        %1593 = vmatpush.bf16.msra.mxu0 %v1559
        %1594 = vmatmul.bf16.gmra.mxu0 %v1584
        %v1595 = vpop.f32.mrf.mxu0
        %v1596 = vadd.f32 0.0, %v1595
        %v1597 = vpop.f32.mrf.mxu0
        %1598 = vdwg.mxu0
        %1599 = vmatpush.bf16.msra.mxu0 0
        %1600 = vmatpush.bf16.msra.mxu0 0
        %1601 = vmatpush.bf16.msra.mxu0 0
        %1602 = vmatpush.bf16.msra.mxu0 0
        %1603 = vmatpush.bf16.msra.mxu0 %v1569
        %1604 = vmatpush.bf16.msra.mxu0 %v1566
        %1605 = vmatpush.bf16.msra.mxu0 %v1563
        %1606 = vmatpush.bf16.msra.mxu0 %v1560
        %1607 = vmatmul.bf16.gmra.mxu0 %v1584
        %v1608 = vpop.f32.mrf.mxu0
        %v1609 = vadd.f32 0.0, %v1608
        %v1610 = vpop.f32.mrf.mxu0
        %1611 = vdwg.mxu0
        %1612 = vmatpush.bf16.msra.mxu0 0
        %1613 = vmatpush.bf16.msra.mxu0 0
        %1614 = vmatpush.bf16.msra.mxu0 0
        %1615 = vmatpush.bf16.msra.mxu0 0
        %1616 = vmatpush.bf16.msra.mxu0 %v1570
        %1617 = vmatpush.bf16.msra.mxu0 %v1567
        %1618 = vmatpush.bf16.msra.mxu0 %v1564
        %1619 = vmatpush.bf16.msra.mxu0 %v1561
        %1620 = vmatmul.bf16.gmra.mxu0 %v1584
        %v1621 = vpop.f32.mrf.mxu0
        %v1622 = vadd.f32 0.0, %v1621
        %v1623 = vpop.f32.mrf.mxu0
        %1624 = vdwg.mxu0
        %v1625 = vmul.f32 %v1596, %v619
        %v1626 = vmul.f32 %v1609, %v620
        %v1627 = vmul.f32 %v1622, %v621
        %v1628 = vpack.c.bf16 %v1625, %v1625
        %v1629 = vpack.c.bf16 %v1626, %v1626
        %v1630 = vpack.c.bf16 %v1627, %v1627
        %v1632 = vsel %vm816, %v1630, 0
        %1634 = vmatpush.bf16.msra.mxu0 %v952
        %1635 = vmatpush.bf16.msra.mxu0 %v951
        %1636 = vmatpush.bf16.msra.mxu0 %v950
        %1637 = vmatpush.bf16.msra.mxu0 %v949
        %1638 = vmatpush.bf16.msra.mxu0 %v948
        %1639 = vmatpush.bf16.msra.mxu0 %v947
        %1640 = vmatpush.bf16.msra.mxu0 %v946
        %1641 = vmatpush.bf16.msra.mxu0 %v945
        %1642 = vmatmul.bf16.gmra.mxu0 %v1628
        %v1643 = vpop.f32.mrf.mxu0
        %v1644 = vadd.f32 0.0, %v1643
        %v1645 = vpop.f32.mrf.mxu0
        %1646 = vdwg.mxu0
        %1647 = vmatpush.bf16.msra.mxu0 %v960
        %1648 = vmatpush.bf16.msra.mxu0 %v959
        %1649 = vmatpush.bf16.msra.mxu0 %v958
        %1650 = vmatpush.bf16.msra.mxu0 %v957
        %1651 = vmatpush.bf16.msra.mxu0 %v956
        %1652 = vmatpush.bf16.msra.mxu0 %v955
        %1653 = vmatpush.bf16.msra.mxu0 %v954
        %1654 = vmatpush.bf16.msra.mxu0 %v953
        %1655 = vmatmul.bf16.gmra.mxu0 %v1629
        %v1656 = vpop.f32.mrf.mxu0
        %v1657 = vadd.f32 %v1644, %v1656
        %v1658 = vpop.f32.mrf.mxu0
        %1659 = vdwg.mxu0
        %1660 = vmatpush.bf16.msra.mxu0 0
        %1661 = vmatpush.bf16.msra.mxu0 0
        %1662 = vmatpush.bf16.msra.mxu0 0
        %1663 = vmatpush.bf16.msra.mxu0 0
        %1664 = vmatpush.bf16.msra.mxu0 %v964
        %1665 = vmatpush.bf16.msra.mxu0 %v963
        %1666 = vmatpush.bf16.msra.mxu0 %v962
        %1667 = vmatpush.bf16.msra.mxu0 %v961
        %1668 = vmatmul.bf16.gmra.mxu0 %v1632
        %v1669 = vpop.f32.mrf.mxu0
        %v1670 = vadd.f32 %v1657, %v1669
        %v1671 = vpop.f32.mrf.mxu0
        %1672 = vdwg.mxu0
        %v1674 = vrot.slane %v1670, 3
        %1675 = vrot.lane.b32.xlu0 %v1674, 96
        %v1676 = vpop.permute.xlu0 %1675
        %v1678 = vsel %vm1032, %v1670, %v1676
        %v1679 = vpack.c.bf16 %v1676, %v1678
        %v1681 = vsel %vm1032, %v1679, 0
        %1683 = vmatpush.bf16.msra.mxu0 0
        %1684 = vmatpush.bf16.msra.mxu0 0
        %1685 = vmatpush.bf16.msra.mxu0 0
        %1686 = vmatpush.bf16.msra.mxu0 0
        %1687 = vmatpush.bf16.msra.mxu0 0
        %1688 = vmatpush.bf16.msra.mxu0 0
        %1689 = vmatpush.bf16.msra.mxu0 0
        %1690 = vmatpush.bf16.msra.mxu0 %v1681
        %1691 = vmatmul.bf16.gmra.mxu0 %v1042
        %v1692 = vpop.f32.mrf.mxu0
        %v1693 = vadd.f32 0.0, %v1692
        %v1694 = vpop.f32.mrf.mxu0
        %v1695 = vadd.f32 0.0, %v1694
        %1696 = vdwg.mxu0
        %v1697 = vpack.c.bf16 %v1695, %v1693
        %s1698 = scalar_lea.vmem %s8, 32
        %v1699 = vld [vmem:[%s1698] sm:$0xf]
        %v1700 = vld [vmem:[%s1698 + $0x4] sm:$0xf]
        %v1701 = vld [vmem:[%s1698 + $0x8] sm:$0xf]
        %v1702 = vld [vmem:[%s1698 + $0xc] sm:$0xf]
        %s1703 = scalar_lea.vmem [#allocation10], 2
        %v1704 = vld [vmem:[%s1703] sm:$0x1]
        %v1706 = vperm.slane %v1704, 0
        %v1712 = vunpack.c.l.b16 %v1699
        %v1713 = vunpack.c.l.b16 %v1700
        %v1714 = vunpack.c.l.b16 %v1701
        %v1715 = vunpack.c.l.b16 %v1702
        %v1716 = vpack.c.b16 %v1713, %v1712
        %v1717 = vpack.c.b16 %v1715, %v1714
        %v1721 = vsel %vm733, %v1697, 0
        %1723 = vmatpush.bf16.msra.mxu0 0
        %1724 = vmatpush.bf16.msra.mxu0 0
        %1725 = vmatpush.bf16.msra.mxu0 0
        %1726 = vmatpush.bf16.msra.mxu0 0
        %1727 = vmatpush.bf16.msra.mxu0 0
        %1728 = vmatpush.bf16.msra.mxu0 0
        %1729 = vmatpush.bf16.msra.mxu0 %v1717
        %1730 = vmatpush.bf16.msra.mxu0 %v1716
        %1731 = vmatmul.bf16.gmra.mxu0 %v1721
        %v1732 = vpop.f32.mrf.mxu0
        %v1733 = vadd.f32 %v1706, %v1732
        %v1734 = vpop.f32.mrf.mxu0
        %v1735 = vadd.f32 %v1706, %v1734
        %1736 = vdwg.mxu0
        %v1737 = vmax.f32 %v1733, 0.0
        %v1738 = vmax.f32 %v1735, 0.0
        %v1739 = vpack.c.bf16 %v1738, %v1737
        %s1740 = scalar_lea.vmem %s10, 64
        %v1741 = vld [vmem:[%s1740] sm:$0xf]
        %v1742 = vld [vmem:[%s1740 + $0x4] sm:$0xf]
        %v1743 = vld [vmem:[%s1740 + $0x8] sm:$0xf]
        %v1744 = vld [vmem:[%s1740 + $0xc] sm:$0xf]
        %v1745 = vld [vmem:[%s1740 + $0x10] sm:$0xf]
        %v1746 = vld [vmem:[%s1740 + $0x14] sm:$0xf]
        %v1747 = vld [vmem:[%s1740 + $0x18] sm:$0xf]
        %v1748 = vld [vmem:[%s1740 + $0x1c] sm:$0xf]
        %s1749 = scalar_lea.vmem [#allocation12], 2
        %v1750 = vld [vmem:[%s1749] sm:$0x1]
        %v1752 = vperm.slane %v1750, 0
        %v1762 = vunpack.c.l.b16 %v1741
        %v1763 = vunpack.c.l.b16 %v1742
        %v1764 = vunpack.c.l.b16 %v1743
        %v1765 = vunpack.c.l.b16 %v1744
        %v1766 = vunpack.c.l.b16 %v1745
        %v1767 = vunpack.c.l.b16 %v1746
        %v1768 = vunpack.c.l.b16 %v1747
        %v1769 = vunpack.c.l.b16 %v1748
        %v1770 = vpack.c.b16 %v1763, %v1762
        %v1771 = vpack.c.b16 %v1765, %v1764
        %v1772 = vpack.c.b16 %v1767, %v1766
        %v1773 = vpack.c.b16 %v1769, %v1768
        %v1779 = vsel %vm816, %v1739, 0
        %1781 = vmatpush.bf16.msra.mxu0 0
        %1782 = vmatpush.bf16.msra.mxu0 0
        %1783 = vmatpush.bf16.msra.mxu0 0
        %1784 = vmatpush.bf16.msra.mxu0 0
        %1785 = vmatpush.bf16.msra.mxu0 %v1773
        %1786 = vmatpush.bf16.msra.mxu0 %v1772
        %1787 = vmatpush.bf16.msra.mxu0 %v1771
        %1788 = vmatpush.bf16.msra.mxu0 %v1770
        %1789 = vmatmul.bf16.gmra.mxu0 %v1779
        %v1790 = vpop.f32.mrf.mxu0
        %v1791 = vadd.f32 %v1752, %v1790
        %v1792 = vpop.f32.mrf.mxu0
        %v1793 = vadd.f32 %v1752, %v1792
        %1794 = vdwg.mxu0
        %v1795 = vadd.f32 %v1475, %v1791
        %v1796 = vadd.f32 %v1476, %v1793
        %v1797 = vpack.c.bf16 %v1796, %v1795
        %1798 = vmatpush.bf16.msra.mxu0 0
        %1799 = vmatpush.bf16.msra.mxu0 0
        %1800 = vmatpush.bf16.msra.mxu0 0
        %1801 = vmatpush.bf16.msra.mxu0 0
        %1802 = vmatpush.bf16.msra.mxu0 0
        %1803 = vmatpush.bf16.msra.mxu0 0
        %1804 = vmatpush.bf16.msra.mxu0 0
        %1805 = vmatpush.bf16.msra.mxu0 %v1797
        %1806 = vmatmul.bf16.gmra.mxu0 %v708
        %v1807 = vpop.f32.mrf.mxu0
        %v1808 = vadd.f32 0.0, %v1807
        %v1809 = vpop.f32.mrf.mxu0
        %v1810 = vadd.f32 0.0, %v1809
        %1811 = vdwg.mxu0
        %v1814 = vrot.slane %v1808, 5
        %v1815 = vrot.slane %v1810, 5
        %v1816 = vsel %vm726, %v1814, %v1815
        %1817 = vrot.lane.b32.xlu0 %v1816, 32
        %v1818 = vpop.permute.xlu0 %1817
        %v1820 = vsel %vm733, %v1808, %v1818
        %v1821 = vpack.c.bf16 %v1820, %v1820
        %s1822 = scalar_lea.vmem %s5, 288
        %v1823 = vld [vmem:[%s1822] sm:$0xff]
        %v1824 = vld [vmem:[%s1822 + $0x8] sm:$0xf]
        %v1825 = vld [vmem:[%s1822 + $0xc] sm:$0xff]
        %v1826 = vld [vmem:[%s1822 + $0x14] sm:$0xf]
        %v1827 = vld [vmem:[%s1822 + $0x18] sm:$0xff]
        %v1828 = vld [vmem:[%s1822 + $0x20] sm:$0xf]
        %v1829 = vld [vmem:[%s1822 + $0x24] sm:$0xff]
        %v1830 = vld [vmem:[%s1822 + $0x2c] sm:$0xf]
        %v1831 = vld [vmem:[%s1822 + $0x30] sm:$0xff]
        %v1832 = vld [vmem:[%s1822 + $0x38] sm:$0xf]
        %v1833 = vld [vmem:[%s1822 + $0x3c] sm:$0xff]
        %v1834 = vld [vmem:[%s1822 + $0x44] sm:$0xf]
        %v1835 = vld [vmem:[%s1822 + $0x48] sm:$0xff]
        %v1836 = vld [vmem:[%s1822 + $0x50] sm:$0xf]
        %v1837 = vld [vmem:[%s1822 + $0x54] sm:$0xff]
        %v1838 = vld [vmem:[%s1822 + $0x5c] sm:$0xf]
        %v1855 = vunpack.c.l.b16 %v1823
        %v1856 = vunpack.c.h.b16 %v1823
        %v1857 = vunpack.c.l.b16 %v1824
        %v1858 = vunpack.c.l.b16 %v1825
        %v1859 = vunpack.c.h.b16 %v1825
        %v1860 = vunpack.c.l.b16 %v1826
        %v1861 = vunpack.c.l.b16 %v1827
        %v1862 = vunpack.c.h.b16 %v1827
        %v1863 = vunpack.c.l.b16 %v1828
        %v1864 = vunpack.c.l.b16 %v1829
        %v1865 = vunpack.c.h.b16 %v1829
        %v1866 = vunpack.c.l.b16 %v1830
        %v1867 = vunpack.c.l.b16 %v1831
        %v1868 = vunpack.c.h.b16 %v1831
        %v1869 = vunpack.c.l.b16 %v1832
        %v1870 = vunpack.c.l.b16 %v1833
        %v1871 = vunpack.c.h.b16 %v1833
        %v1872 = vunpack.c.l.b16 %v1834
        %v1873 = vunpack.c.l.b16 %v1835
        %v1874 = vunpack.c.h.b16 %v1835
        %v1875 = vunpack.c.l.b16 %v1836
        %v1876 = vunpack.c.l.b16 %v1837
        %v1877 = vunpack.c.h.b16 %v1837
        %v1878 = vunpack.c.l.b16 %v1838
        %v1879 = vpack.c.b16 %v1858, %v1855
        %v1880 = vpack.c.b16 %v1859, %v1856
        %v1881 = vpack.c.b16 %v1860, %v1857
        %v1882 = vpack.c.b16 %v1864, %v1861
        %v1883 = vpack.c.b16 %v1865, %v1862
        %v1884 = vpack.c.b16 %v1866, %v1863
        %v1885 = vpack.c.b16 %v1870, %v1867
        %v1886 = vpack.c.b16 %v1871, %v1868
        %v1887 = vpack.c.b16 %v1872, %v1869
        %v1888 = vpack.c.b16 %v1876, %v1873
        %v1889 = vpack.c.b16 %v1877, %v1874
        %v1890 = vpack.c.b16 %v1878, %v1875
        %v1904 = vsel %vm816, %v1821, 0
        %1906 = vmatpush.bf16.msra.mxu0 0
        %1907 = vmatpush.bf16.msra.mxu0 0
        %1908 = vmatpush.bf16.msra.mxu0 0
        %1909 = vmatpush.bf16.msra.mxu0 0
        %1910 = vmatpush.bf16.msra.mxu0 %v1888
        %1911 = vmatpush.bf16.msra.mxu0 %v1885
        %1912 = vmatpush.bf16.msra.mxu0 %v1882
        %1913 = vmatpush.bf16.msra.mxu0 %v1879
        %1914 = vmatmul.bf16.gmra.mxu0 %v1904
        %v1915 = vpop.f32.mrf.mxu0
        %v1916 = vadd.f32 0.0, %v1915
        %v1917 = vpop.f32.mrf.mxu0
        %1918 = vdwg.mxu0
        %1919 = vmatpush.bf16.msra.mxu0 0
        %1920 = vmatpush.bf16.msra.mxu0 0
        %1921 = vmatpush.bf16.msra.mxu0 0
        %1922 = vmatpush.bf16.msra.mxu0 0
        %1923 = vmatpush.bf16.msra.mxu0 %v1889
        %1924 = vmatpush.bf16.msra.mxu0 %v1886
        %1925 = vmatpush.bf16.msra.mxu0 %v1883
        %1926 = vmatpush.bf16.msra.mxu0 %v1880
        %1927 = vmatmul.bf16.gmra.mxu0 %v1904
        %v1928 = vpop.f32.mrf.mxu0
        %v1929 = vadd.f32 0.0, %v1928
        %v1930 = vpop.f32.mrf.mxu0
        %1931 = vdwg.mxu0
        %1932 = vmatpush.bf16.msra.mxu0 0
        %1933 = vmatpush.bf16.msra.mxu0 0
        %1934 = vmatpush.bf16.msra.mxu0 0
        %1935 = vmatpush.bf16.msra.mxu0 0
        %1936 = vmatpush.bf16.msra.mxu0 %v1890
        %1937 = vmatpush.bf16.msra.mxu0 %v1887
        %1938 = vmatpush.bf16.msra.mxu0 %v1884
        %1939 = vmatpush.bf16.msra.mxu0 %v1881
        %1940 = vmatmul.bf16.gmra.mxu0 %v1904
        %v1941 = vpop.f32.mrf.mxu0
        %v1942 = vadd.f32 0.0, %v1941
        %v1943 = vpop.f32.mrf.mxu0
        %1944 = vdwg.mxu0
        %v1945 = vmul.f32 %v1916, %v619
        %v1946 = vmul.f32 %v1929, %v620
        %v1947 = vmul.f32 %v1942, %v621
        %v1948 = vpack.c.bf16 %v1945, %v1945
        %v1949 = vpack.c.bf16 %v1946, %v1946
        %v1950 = vpack.c.bf16 %v1947, %v1947
        %v1952 = vsel %vm816, %v1950, 0
        %1954 = vmatpush.bf16.msra.mxu0 %v952
        %1955 = vmatpush.bf16.msra.mxu0 %v951
        %1956 = vmatpush.bf16.msra.mxu0 %v950
        %1957 = vmatpush.bf16.msra.mxu0 %v949
        %1958 = vmatpush.bf16.msra.mxu0 %v948
        %1959 = vmatpush.bf16.msra.mxu0 %v947
        %1960 = vmatpush.bf16.msra.mxu0 %v946
        %1961 = vmatpush.bf16.msra.mxu0 %v945
        %1962 = vmatmul.bf16.gmra.mxu0 %v1948
        %v1963 = vpop.f32.mrf.mxu0
        %v1964 = vadd.f32 0.0, %v1963
        %v1965 = vpop.f32.mrf.mxu0
        %1966 = vdwg.mxu0
        %1967 = vmatpush.bf16.msra.mxu0 %v960
        %1968 = vmatpush.bf16.msra.mxu0 %v959
        %1969 = vmatpush.bf16.msra.mxu0 %v958
        %1970 = vmatpush.bf16.msra.mxu0 %v957
        %1971 = vmatpush.bf16.msra.mxu0 %v956
        %1972 = vmatpush.bf16.msra.mxu0 %v955
        %1973 = vmatpush.bf16.msra.mxu0 %v954
        %1974 = vmatpush.bf16.msra.mxu0 %v953
        %1975 = vmatmul.bf16.gmra.mxu0 %v1949
        %v1976 = vpop.f32.mrf.mxu0
        %v1977 = vadd.f32 %v1964, %v1976
        %v1978 = vpop.f32.mrf.mxu0
        %1979 = vdwg.mxu0
        %1980 = vmatpush.bf16.msra.mxu0 0
        %1981 = vmatpush.bf16.msra.mxu0 0
        %1982 = vmatpush.bf16.msra.mxu0 0
        %1983 = vmatpush.bf16.msra.mxu0 0
        %1984 = vmatpush.bf16.msra.mxu0 %v964
        %1985 = vmatpush.bf16.msra.mxu0 %v963
        %1986 = vmatpush.bf16.msra.mxu0 %v962
        %1987 = vmatpush.bf16.msra.mxu0 %v961
        %1988 = vmatmul.bf16.gmra.mxu0 %v1952
        %v1989 = vpop.f32.mrf.mxu0
        %v1990 = vadd.f32 %v1977, %v1989
        %v1991 = vpop.f32.mrf.mxu0
        %1992 = vdwg.mxu0
        %v1994 = vrot.slane %v1990, 3
        %1995 = vrot.lane.b32.xlu0 %v1994, 96
        %v1996 = vpop.permute.xlu0 %1995
        %v1998 = vsel %vm1032, %v1990, %v1996
        %v1999 = vpack.c.bf16 %v1996, %v1998
        %v2001 = vsel %vm1032, %v1999, 0
        %2003 = vmatpush.bf16.msra.mxu0 0
        %2004 = vmatpush.bf16.msra.mxu0 0
        %2005 = vmatpush.bf16.msra.mxu0 0
        %2006 = vmatpush.bf16.msra.mxu0 0
        %2007 = vmatpush.bf16.msra.mxu0 0
        %2008 = vmatpush.bf16.msra.mxu0 0
        %2009 = vmatpush.bf16.msra.mxu0 0
        %2010 = vmatpush.bf16.msra.mxu0 %v2001
        %2011 = vmatmul.bf16.gmra.mxu0 %v1042
        %v2012 = vpop.f32.mrf.mxu0
        %v2013 = vadd.f32 0.0, %v2012
        %v2014 = vpop.f32.mrf.mxu0
        %v2015 = vadd.f32 0.0, %v2014
        %2016 = vdwg.mxu0
        %v2017 = vpack.c.bf16 %v2015, %v2013
        %s2018 = scalar_lea.vmem %s8, 48
        %v2019 = vld [vmem:[%s2018] sm:$0xf]
        %v2020 = vld [vmem:[%s2018 + $0x4] sm:$0xf]
        %v2021 = vld [vmem:[%s2018 + $0x8] sm:$0xf]
        %v2022 = vld [vmem:[%s2018 + $0xc] sm:$0xf]
        %s2023 = scalar_lea.vmem [#allocation10], 3
        %v2024 = vld [vmem:[%s2023] sm:$0x1]
        %v2026 = vperm.slane %v2024, 0
        %v2032 = vunpack.c.l.b16 %v2019
        %v2033 = vunpack.c.l.b16 %v2020
        %v2034 = vunpack.c.l.b16 %v2021
        %v2035 = vunpack.c.l.b16 %v2022
        %v2036 = vpack.c.b16 %v2033, %v2032
        %v2037 = vpack.c.b16 %v2035, %v2034
        %v2041 = vsel %vm733, %v2017, 0
        %2043 = vmatpush.bf16.msra.mxu0 0
        %2044 = vmatpush.bf16.msra.mxu0 0
        %2045 = vmatpush.bf16.msra.mxu0 0
        %2046 = vmatpush.bf16.msra.mxu0 0
        %2047 = vmatpush.bf16.msra.mxu0 0
        %2048 = vmatpush.bf16.msra.mxu0 0
        %2049 = vmatpush.bf16.msra.mxu0 %v2037
        %2050 = vmatpush.bf16.msra.mxu0 %v2036
        %2051 = vmatmul.bf16.gmra.mxu0 %v2041
        %v2052 = vpop.f32.mrf.mxu0
        %v2053 = vadd.f32 %v2026, %v2052
        %v2054 = vpop.f32.mrf.mxu0
        %v2055 = vadd.f32 %v2026, %v2054
        %2056 = vdwg.mxu0
        %v2057 = vmax.f32 %v2053, 0.0
        %v2058 = vmax.f32 %v2055, 0.0
        %v2059 = vpack.c.bf16 %v2058, %v2057
        %s2060 = scalar_lea.vmem %s10, 96
        %v2061 = vld [vmem:[%s2060] sm:$0xf]
        %v2062 = vld [vmem:[%s2060 + $0x4] sm:$0xf]
        %v2063 = vld [vmem:[%s2060 + $0x8] sm:$0xf]
        %v2064 = vld [vmem:[%s2060 + $0xc] sm:$0xf]
        %v2065 = vld [vmem:[%s2060 + $0x10] sm:$0xf]
        %v2066 = vld [vmem:[%s2060 + $0x14] sm:$0xf]
        %v2067 = vld [vmem:[%s2060 + $0x18] sm:$0xf]
        %v2068 = vld [vmem:[%s2060 + $0x1c] sm:$0xf]
        %s2069 = scalar_lea.vmem [#allocation12], 3
        %v2070 = vld [vmem:[%s2069] sm:$0x1]
        %v2072 = vperm.slane %v2070, 0
        %v2082 = vunpack.c.l.b16 %v2061
        %v2083 = vunpack.c.l.b16 %v2062
        %v2084 = vunpack.c.l.b16 %v2063
        %v2085 = vunpack.c.l.b16 %v2064
        %v2086 = vunpack.c.l.b16 %v2065
        %v2087 = vunpack.c.l.b16 %v2066
        %v2088 = vunpack.c.l.b16 %v2067
        %v2089 = vunpack.c.l.b16 %v2068
        %v2090 = vpack.c.b16 %v2083, %v2082
        %v2091 = vpack.c.b16 %v2085, %v2084
        %v2092 = vpack.c.b16 %v2087, %v2086
        %v2093 = vpack.c.b16 %v2089, %v2088
        %v2099 = vsel %vm816, %v2059, 0
        %2101 = vmatpush.bf16.msra.mxu0 0
        %2102 = vmatpush.bf16.msra.mxu0 0
        %2103 = vmatpush.bf16.msra.mxu0 0
        %2104 = vmatpush.bf16.msra.mxu0 0
        %2105 = vmatpush.bf16.msra.mxu0 %v2093
        %2106 = vmatpush.bf16.msra.mxu0 %v2092
        %2107 = vmatpush.bf16.msra.mxu0 %v2091
        %2108 = vmatpush.bf16.msra.mxu0 %v2090
        %2109 = vmatmul.bf16.gmra.mxu0 %v2099
        %v2110 = vpop.f32.mrf.mxu0
        %v2111 = vadd.f32 %v2072, %v2110
        %v2112 = vpop.f32.mrf.mxu0
        %v2113 = vadd.f32 %v2072, %v2112
        %2114 = vdwg.mxu0
        %v2115 = vpack.c.bf16 %v2113, %v2111
        %v2117 = vperm.slane %v666, 0
        %v2123 = vunpack.c.l.b16 %v662
        %v2124 = vunpack.c.l.b16 %v663
        %v2125 = vunpack.c.l.b16 %v664
        %v2126 = vunpack.c.l.b16 %v665
        %v2127 = vpack.c.b16 %v2124, %v2123
        %v2128 = vpack.c.b16 %v2126, %v2125
        %v2132 = vsel %vm733, %v2115, 0
        %2134 = vmatpush.bf16.msra.mxu0 0
        %2135 = vmatpush.bf16.msra.mxu0 0
        %2136 = vmatpush.bf16.msra.mxu0 0
        %2137 = vmatpush.bf16.msra.mxu0 0
        %2138 = vmatpush.bf16.msra.mxu0 0
        %2139 = vmatpush.bf16.msra.mxu0 0
        %2140 = vmatpush.bf16.msra.mxu0 %v2128
        %2141 = vmatpush.bf16.msra.mxu0 %v2127
        %2142 = vmatmul.bf16.gmra.mxu0 %v2132
        %v2143 = vpop.f32.mrf.mxu0
        %v2144 = vadd.f32 %v2117, %v2143
        %v2145 = vpop.f32.mrf.mxu0
        %v2146 = vadd.f32 %v2117, %v2145
        %2147 = vdwg.mxu0
        %2148 = vst [vmem:[%s610] sm:$0xff] %v2144
        %2149 = vst [vmem:[%s610 + $0x8] sm:$0xff] %v2146
        %p2150 = scmp.lt.s32.totalorder %s30, 1
        %s2151 = scalar_select %p2150, %s30, 1
        %s2152 = smul.addr %s2151, 2
        %s2153 = smul.addr %s2152, 8
        %s2154 = scalar_lea.vmem %s14, %s2153
        // Predicated region
        $region113: #{fno_forward_pallas.1} parent=75 // pred_check
          %p2155 = pneg %p347
        $region114: #{fno_forward_pallas.1} parent=75 // pred_check_branch
          %2157 = sbr.rel (%p2155) target = $region116
        $region115: #{fno_forward_pallas.1} parent=75 // pred_region
          _
        $region116: #{fno_forward_pallas.1} parent=75 // pred_fallthru
          _
      $region76: #{fno_forward_pallas.1} parent=5 // pred_fallthru
        _
      %p2158 = scmp.le.s32.totalorder 2, %s25
      // Predicated region
      $region117: #{fno_forward_pallas.1} parent=5 // pred_check
        %p2159 = pneg %p2158
      $region118: #{fno_forward_pallas.1} parent=5 // pred_check_branch
        %2161 = sbr.rel (%p2159) target = $region120
      $region119: #{fno_forward_pallas.1} parent=5 // pred_region
        %s2162 = ssub.s32 %s25, 2
        // Predicated region
        $region121: #{fno_forward_pallas.1} parent=119 // pred_check
          %p2163 = pneg %p353
        $region122: #{fno_forward_pallas.1} parent=119 // pred_check_branch
          %2165 = sbr.rel (%p2163) target = $region124
        $region123: #{fno_forward_pallas.1} parent=119 // pred_region
          %p2166 = scmp.lt.s32.totalorder %s31, 1
          %s2167 = scalar_select %p2166, %s31, 1
          %s2168 = smul.addr %s2167, 2
          %s2169 = smul.addr %s2168, 8
          %s2170 = scalar_lea.vmem %s14, %s2169
        $region124: #{fno_forward_pallas.1} parent=119 // pred_fallthru
          _
      $region120: #{fno_forward_pallas.1} parent=5 // pred_fallthru
        _
    $region6: #{fno_forward_pallas.1} parent=1 // loop_footer
      %s29 = sadd.s32 1, %s25
    $region7: #{fno_forward_pallas.1} parent=1 // loop_footer_branch
      %24 = sbr.rel target = $region3
    $region8: #{fno_forward_pallas.1} parent=1 // loop_exit
      _
    %2171 = vsyncpa [#allocation3], 1
    %s2172 = scalar_lea.sflag [#allocation3], 1
    %2173 = vsyncpa %s2172, 1
    %2174 = vsyncpa [#allocation5], 1
    %2175 = vsyncpa [#allocation8], 1
    %2176 = vsyncpa [#allocation11], 1
    %2177 = vsyncpa [#allocation14], 1

</llo_original>
